<compile_context>
chip_gen: v6e
topology: v6e:2x2x1
jax: 0.10.0
libtpu: 0.0.40
codegen_flags: <defaults>
</compile_context>

<pallas_src>
import math
import functools

import jax
import jax.numpy as jnp
from jax.experimental import pallas as pl
from jax.experimental.pallas import tpu as pltpu


def _round_up(a, b):
    return (a + b - 1) // b * b


def _reid_loss_kernel(emb_scale, tile_c,
                      x_ref, w_ref, b_ref, tgt_ref, msk_ref,
                      out_ref,
                      xn_ref, m_ref, l_ref, tl_ref):
    # x_ref  : (TILE_N, E)      f32   gathered embeddings (rows of this tile)
    # w_ref  : (E, TILE_C)      bf16  classifier weight tile
    # b_ref  : (1, TILE_C)      f32   classifier bias tile (padded cols = -1e30)
    # tgt_ref: (TILE_N, 1)      int32 targets (-1 == ignore)
    # msk_ref: (TILE_N, 1)      f32   {0,1} reid_mask > 0
    # out_ref: (1, 8, 128)      f32   per-row-tile partial loss sum (broadcast)
    # scratch: xn (TILE_N,E) bf16 ; m/l/tl (TILE_N,1) f32 online-LSE accumulators
    c = pl.program_id(1)
    num_c = pl.num_programs(1)

    @pl.when(c == 0)
    def _init():
        x = x_ref[...].astype(jnp.float32)                          # (TN, E)
        ssq = jnp.sum(x * x, axis=-1, keepdims=True)                # (TN, 1)
        # F.normalize(p=2, eps=1e-12) fused with emb_scale via one EUP rsqrt.
        inv = jax.lax.rsqrt(jnp.maximum(ssq, 1e-24)) * emb_scale
        xn_ref[...] = (x * inv).astype(jnp.bfloat16)
        m_ref[...] = jnp.full_like(m_ref, -1e30)
        l_ref[...] = jnp.zeros_like(l_ref)
        tl_ref[...] = jnp.zeros_like(tl_ref)

    # Classifier tile on the MXU (bf16 operands, f32 accumulate).
    logits = jnp.dot(xn_ref[...], w_ref[...],
                     preferred_element_type=jnp.float32) + b_ref[...]   # (TN, TC)

    # Online (streaming) log-sum-exp over the C tiles.
    m_prev = m_ref[...]
    m_new = jnp.maximum(m_prev, jnp.max(logits, axis=-1, keepdims=True))
    alpha = jnp.exp(m_prev - m_new)
    p = jnp.exp(logits - m_new)
    l_ref[...] = alpha * l_ref[...] + jnp.sum(p, axis=-1, keepdims=True)
    m_ref[...] = m_new

    # Target logit: matches in exactly one C tile (never if tgt == -1).
    tgt = tgt_ref[...]                                               # (TN, 1)
    col = jax.lax.broadcasted_iota(jnp.int32, logits.shape, 1) + c * tile_c
    tl_ref[...] += jnp.sum(jnp.where(col == tgt, logits, 0.0),
                           axis=-1, keepdims=True)

    @pl.when(c == num_c - 1)
    def _finalize():
        lse = m_ref[...] + jnp.log(l_ref[...])                       # (TN, 1)
        ce = lse - tl_ref[...]                                       # (TN, 1)
        # ignore_index=-1 rows and mask==0 rows contribute 0 to the sum.
        valid = msk_ref[...] * (tgt_ref[...] != -1).astype(jnp.float32)
        part = jnp.sum(ce * valid, axis=0, keepdims=True)            # (1, 1)
        out_ref[...] = jnp.broadcast_to(part, out_ref.shape)


def reid_loss(pred, ind, reid_mask, target, w, b, emb_scale,
              tile_n=128, max_tile_c=512):
    """JAX equivalent of ReidLoss.forward.

    pred      : (B, E, H, W)  float32   (NCHW, like PyTorch)
    ind       : (B, K)        int32     indices into H*W
    reid_mask : (B, K)        float/int, >0 selects rows
    target    : (B, K)        int32     class ids, -1 == ignore
    w         : (E, C)        classifier weight (C = nid + 1; torch weight.T)
    b         : (C,)          classifier bias
    """
    B, E, H, W_sp = pred.shape
    K = ind.shape[1]
    C = w.shape[1]
    N = B * K

    # ---- _tranpose_and_gather_feat without transposing the whole map --------
    # Gather K spatial columns per image directly from the NCHW (B, E, H*W)
    # view; only the tiny (B, E, K) result is transposed afterwards.
    feat = pred.reshape(B, E, H * W_sp)
    idx = jnp.broadcast_to(ind.astype(jnp.int32)[:, None, :], (B, E, K))
    gathered = jnp.take_along_axis(feat, idx, axis=2)                # (B, E, K)
    x = jnp.swapaxes(gathered, 1, 2).reshape(N, E)                   # (N, E)

    # ---- pad to TPU-friendly tiles ------------------------------------------
    tile_n = max(8, int(tile_n))
    n_pad = _round_up(N, tile_n)
    e_pad = _round_up(E, 16)                       # bf16 sublane packing
    tile_c = min(int(max_tile_c), _round_up(C, 128))
    c_pad = _round_up(C, tile_c)

    x = jnp.pad(x.astype(jnp.float32), ((0, n_pad - N), (0, e_pad - E)))
    w_p = jnp.pad(w, ((0, e_pad - E), (0, c_pad - C))).astype(jnp.bfloat16)
    # Padded classifier columns get a huge negative bias so they never affect
    # the max / log-sum-exp (exp underflows to exactly 0).
    b_p = jnp.pad(b.astype(jnp.float32), (0, c_pad - C),
                  constant_values=-1e30).reshape(1, c_pad)
    tgt = jnp.pad(target.reshape(N).astype(jnp.int32), (0, n_pad - N),
                  constant_values=-1).reshape(n_pad, 1)
    msk_flat = (reid_mask > 0).astype(jnp.float32).reshape(N)
    msk = jnp.pad(msk_flat, (0, n_pad - N)).reshape(n_pad, 1)

    r_tiles = n_pad // tile_n
    c_tiles = c_pad // tile_c

    kernel = functools.partial(_reid_loss_kernel, float(emb_scale), tile_c)
    parts = pl.pallas_call(
        kernel,
        out_shape=jax.ShapeDtypeStruct((r_tiles, 8, 128), jnp.float32),
        grid_spec=pltpu.PrefetchScalarGridSpec(
            num_scalar_prefetch=0,
            grid=(r_tiles, c_tiles),                 # rows parallel, C reduction last
            in_specs=[
                pl.BlockSpec((tile_n, e_pad), lambda r, c: (r, 0)),   # x
                pl.BlockSpec((e_pad, tile_c), lambda r, c: (0, c)),   # w (bf16)
                pl.BlockSpec((1, tile_c),     lambda r, c: (0, c)),   # b
                pl.BlockSpec((tile_n, 1),     lambda r, c: (r, 0)),   # tgt
                pl.BlockSpec((tile_n, 1),     lambda r, c: (r, 0)),   # msk
            ],
            out_specs=pl.BlockSpec((1, 8, 128), lambda r, c: (r, 0, 0)),
            scratch_shapes=[
                pltpu.VMEM((tile_n, e_pad), jnp.bfloat16),   # cached normalized x
                pltpu.VMEM((tile_n, 1), jnp.float32),        # running max m
                pltpu.VMEM((tile_n, 1), jnp.float32),        # running sum l
                pltpu.VMEM((tile_n, 1), jnp.float32),        # target logit
            ],
        ),
        compiler_params=pltpu.CompilerParams(
            dimension_semantics=("parallel", "arbitrary"),
            vmem_limit_bytes=32 * 1024 * 1024,
        ),
    )(x, w_p, b_p, tgt, msk)

    # Divisor = len(id_target) = number of mask>0 rows (the reference uses
    # reduction='sum' then divides by len(id_target), so -1 targets still count
    # in the divisor).  len==0 -> numerator is 0 -> loss 0, matching PyTorch.
    cnt = jnp.sum(msk_flat)
    loss = jnp.sum(parts[:, 0, 0]) / jnp.maximum(cnt, 1.0)
    return loss


if __name__ == "__main__":
    key = jax.random.PRNGKey(0)
    B, E, H, W, K = 2, 32, 16, 16, 8     # E = opt.heads['reid']
    nid = 31                             # opt.nid
    C = nid + 1
    emb_scale = math.sqrt(2) * math.log(nid)

    k1, k2, k3, k4, k5, k6 = jax.random.split(key, 6)
    pred = jax.random.normal(k1, (B, E, H, W), jnp.float32)
    ind = jax.random.randint(k2, (B, K), 0, H * W, dtype=jnp.int32)
    reid_mask = (jax.random.uniform(k3, (B, K)) > 0.4).astype(jnp.float32)
    # targets in [-1, nid]; -1 exercises ignore_index
    target = jax.random.randint(k4, (B, K), -1, nid + 1, dtype=jnp.int32)

    # Deterministic synthetic classifier params (torch Linear(E, nid+1) -> (E, C) here).
    w_cls = jax.random.normal(k5, (E, C), jnp.float32) * 0.02
    b_cls = jax.random.normal(k6, (C,), jnp.float32) * 0.01

    loss = reid_loss(pred, ind, reid_mask, target, w_cls, b_cls, emb_scale)
    jax.block_until_ready(loss)
    print("KERNEL_OK")
</pallas_src>

<mosaic_0001>
module attributes {stable_mosaic.version = 11 : i64} {
  func.func @_reid_loss_kernel(%arg0: i32, %arg1: i32, %arg2: memref<128x32xf32, #tpu.memory_space<vmem>>, %arg3: memref<32x128xbf16, #tpu.memory_space<vmem>>, %arg4: memref<1x128xf32, #tpu.memory_space<vmem>>, %arg5: memref<128x1xi32, #tpu.memory_space<vmem>>, %arg6: memref<128x1xf32, #tpu.memory_space<vmem>>, %arg7: memref<1x8x128xf32, #tpu.memory_space<vmem>>, %arg8: memref<128x32xbf16, #tpu.memory_space<vmem>>, %arg9: memref<128x1xf32, #tpu.memory_space<vmem>>, %arg10: memref<128x1xf32, #tpu.memory_space<vmem>>, %arg11: memref<128x1xf32, #tpu.memory_space<vmem>>) attributes {dimension_semantics = [#tpu.dimension_semantics<parallel>, #tpu.dimension_semantics<arbitrary>], iteration_bounds = array<i64: 1, 1>, scalar_prefetch = 0 : i64, scratch_operands = 4 : i64, tpu.core_type = #tpu.core_type<tc>, window_params = [{transform_indices = @transform_0, window_bounds = array<i64: 128, 32>}, {transform_indices = @transform_1, window_bounds = array<i64: 32, 128>}, {transform_indices = @transform_2, window_bounds = array<i64: 1, 128>}, {transform_indices = @transform_3, window_bounds = array<i64: 128, 1>}, {transform_indices = @transform_4, window_bounds = array<i64: 128, 1>}, {transform_indices = @transform_5, window_bounds = array<i64: 1, 8, 128>}]} {
    %c0_i32 = arith.constant 0 : i32
    %0 = arith.cmpi eq, %arg1, %c0_i32 : i32
    %1 = arith.extui %0 : i1 to i32
    %c0_i32_0 = arith.constant 0 : i32
    %2 = arith.cmpi ne, %1, %c0_i32_0 : i32
    scf.if %2 {
      %c0_26 = arith.constant 0 : index
      %c0_27 = arith.constant 0 : index
      %42 = vector.load %arg2[%c0_26, %c0_27] : memref<128x32xf32, #tpu.memory_space<vmem>>, vector<128x32xf32>
      %43 = arith.mulf %42, %42 : vector<128x32xf32>
      %cst_28 = arith.constant dense<0.000000e+00> : vector<128xf32>
      %44 = vector.multi_reduction <add>, %43, %cst_28 [1] : vector<128x32xf32> to vector<128xf32>
      %45 = vector.shape_cast %44 : vector<128xf32> to vector<128x1xf32>
      %cst_29 = arith.constant 1.000000e-24 : f32
      %46 = vector.broadcast %cst_29 : f32 to vector<128x1xf32>
      %47 = arith.maximumf %45, %46 : vector<128x1xf32>
      %48 = math.rsqrt %47 : vector<128x1xf32>
      %cst_30 = arith.constant 4.85639143 : f32
      %49 = vector.broadcast %cst_30 : f32 to vector<128x1xf32>
      %50 = arith.mulf %48, %49 : vector<128x1xf32>
      %51 = vector.broadcast %50 : vector<128x1xf32> to vector<128x32xf32>
      %52 = arith.mulf %42, %51 : vector<128x32xf32>
      %53 = arith.truncf %52 : vector<128x32xf32> to vector<128x32xbf16>
      %c0_31 = arith.constant 0 : index
      %c0_32 = arith.constant 0 : index
      %54 = vector.load %arg8[%c0_31, %c0_32] : memref<128x32xbf16, #tpu.memory_space<vmem>>, vector<128x32xbf16>
      tpu.vector_store %arg8[%c0_31, %c0_32], %53 {strides = array<i32>} : memref<128x32xbf16, #tpu.memory_space<vmem>>, vector<128x32xbf16>,
      %cst_33 = arith.constant -1.000000e+30 : f32
      %55 = vector.broadcast %cst_33 : f32 to vector<128x1xf32>
      %c0_34 = arith.constant 0 : index
      %c0_35 = arith.constant 0 : index
      %56 = vector.load %arg9[%c0_34, %c0_35] : memref<128x1xf32, #tpu.memory_space<vmem>>, vector<128x1xf32>
      tpu.vector_store %arg9[%c0_34, %c0_35], %55 {strides = array<i32>} : memref<128x1xf32, #tpu.memory_space<vmem>>, vector<128x1xf32>,
      %cst_36 = arith.constant 0.000000e+00 : f32
      %57 = vector.broadcast %cst_36 : f32 to vector<128x1xf32>
      %c0_37 = arith.constant 0 : index
      %c0_38 = arith.constant 0 : index
      %58 = vector.load %arg10[%c0_37, %c0_38] : memref<128x1xf32, #tpu.memory_space<vmem>>, vector<128x1xf32>
      tpu.vector_store %arg10[%c0_37, %c0_38], %57 {strides = array<i32>} : memref<128x1xf32, #tpu.memory_space<vmem>>, vector<128x1xf32>,
      %cst_39 = arith.constant 0.000000e+00 : f32
      %59 = vector.broadcast %cst_39 : f32 to vector<128x1xf32>
      %c0_40 = arith.constant 0 : index
      %c0_41 = arith.constant 0 : index
      %60 = vector.load %arg11[%c0_40, %c0_41] : memref<128x1xf32, #tpu.memory_space<vmem>>, vector<128x1xf32>
      tpu.vector_store %arg11[%c0_40, %c0_41], %59 {strides = array<i32>} : memref<128x1xf32, #tpu.memory_space<vmem>>, vector<128x1xf32>,
    } else {
    }
    %c0 = arith.constant 0 : index
    %c0_1 = arith.constant 0 : index
    %3 = vector.load %arg8[%c0, %c0_1] : memref<128x32xbf16, #tpu.memory_space<vmem>>, vector<128x32xbf16>
    %c0_2 = arith.constant 0 : index
    %c0_3 = arith.constant 0 : index
    %4 = vector.load %arg3[%c0_2, %c0_3] : memref<32x128xbf16, #tpu.memory_space<vmem>>, vector<32x128xbf16>
    %cst = arith.constant dense<0.000000e+00> : vector<128x128xf32>
    %5 = tpu.matmul %3, %4, %cst {dimension_numbers = #tpu.dot_dimension_numbers<[1], [0], [0], [1], [0, 0, 1, 1], [], []>} : vector<128x32xbf16>, vector<32x128xbf16>, vector<128x128xf32> -> vector<128x128xf32>
    %c0_4 = arith.constant 0 : index
    %c0_5 = arith.constant 0 : index
    %6 = vector.load %arg4[%c0_4, %c0_5] : memref<1x128xf32, #tpu.memory_space<vmem>>, vector<1x128xf32>
    %7 = vector.broadcast %6 : vector<1x128xf32> to vector<128x128xf32>
    %8 = arith.addf %5, %7 : vector<128x128xf32>
    %c0_6 = arith.constant 0 : index
    %c0_7 = arith.constant 0 : index
    %9 = vector.load %arg9[%c0_6, %c0_7] : memref<128x1xf32, #tpu.memory_space<vmem>>, vector<128x1xf32>
    %cst_8 = arith.constant dense<0xFF800000> : vector<128xf32>
    %10 = vector.multi_reduction <maximumf>, %8, %cst_8 [1] : vector<128x128xf32> to vector<128xf32>
    %11 = vector.shape_cast %10 : vector<128xf32> to vector<128x1xf32>
    %12 = arith.maximumf %9, %11 : vector<128x1xf32>
    %13 = arith.subf %9, %12 : vector<128x1xf32>
    %14 = math.exp %13 : vector<128x1xf32>
    %15 = vector.broadcast %12 : vector<128x1xf32> to vector<128x128xf32>
    %16 = arith.subf %8, %15 : vector<128x128xf32>
    %17 = math.exp %16 : vector<128x128xf32>
    %c0_9 = arith.constant 0 : index
    %c0_10 = arith.constant 0 : index
    %18 = vector.load %arg10[%c0_9, %c0_10] : memref<128x1xf32, #tpu.memory_space<vmem>>, vector<128x1xf32>
    %19 = arith.mulf %14, %18 : vector<128x1xf32>
    %cst_11 = arith.constant dense<0.000000e+00> : vector<128xf32>
    %20 = vector.multi_reduction <add>, %17, %cst_11 [1] : vector<128x128xf32> to vector<128xf32>
    %21 = vector.shape_cast %20 : vector<128xf32> to vector<128x1xf32>
    %22 = arith.addf %19, %21 : vector<128x1xf32>
    %c0_12 = arith.constant 0 : index
    %c0_13 = arith.constant 0 : index
    %23 = vector.load %arg10[%c0_12, %c0_13] : memref<128x1xf32, #tpu.memory_space<vmem>>, vector<128x1xf32>
    tpu.vector_store %arg10[%c0_12, %c0_13], %22 {strides = array<i32>} : memref<128x1xf32, #tpu.memory_space<vmem>>, vector<128x1xf32>,
    %c0_14 = arith.constant 0 : index
    %c0_15 = arith.constant 0 : index
    %24 = vector.load %arg9[%c0_14, %c0_15] : memref<128x1xf32, #tpu.memory_space<vmem>>, vector<128x1xf32>
    tpu.vector_store %arg9[%c0_14, %c0_15], %12 {strides = array<i32>} : memref<128x1xf32, #tpu.memory_space<vmem>>, vector<128x1xf32>,
    %c0_16 = arith.constant 0 : index
    %c0_17 = arith.constant 0 : index
    %25 = vector.load %arg5[%c0_16, %c0_17] : memref<128x1xi32, #tpu.memory_space<vmem>>, vector<128x1xi32>
    %26 = tpu.iota {dimensions = array<i32: 1>} : vector<128x128xi32>
    %c128_i32 = arith.constant 128 : i32
    %27 = arith.muli %arg1, %c128_i32 : i32
    %28 = vector.broadcast %27 : i32 to vector<128x128xi32>
    %29 = arith.addi %26, %28 : vector<128x128xi32>
    %c0_18 = arith.constant 0 : index
    %c0_19 = arith.constant 0 : index
    %30 = vector.load %arg11[%c0_18, %c0_19] : memref<128x1xf32, #tpu.memory_space<vmem>>, vector<128x1xf32>
    %31 = vector.broadcast %25 : vector<128x1xi32> to vector<128x128xi32>
    %32 = arith.cmpi eq, %29, %31 : vector<128x128xi32>
    %cst_20 = arith.constant 0.000000e+00 : f32
    %33 = vector.broadcast %cst_20 : f32 to vector<128x128xf32>
    %34 = arith.select %32, %8, %33 : vector<128x128xi1>, vector<128x128xf32>
    %cst_21 = arith.constant dense<0.000000e+00> : vector<128xf32>
    %35 = vector.multi_reduction <add>, %34, %cst_21 [1] : vector<128x128xf32> to vector<128xf32>
    %36 = vector.shape_cast %35 : vector<128xf32> to vector<128x1xf32>
    %37 = arith.addf %30, %36 : vector<128x1xf32>
    %c0_22 = arith.constant 0 : index
    %c0_23 = arith.constant 0 : index
    %38 = vector.load %arg11[%c0_22, %c0_23] : memref<128x1xf32, #tpu.memory_space<vmem>>, vector<128x1xf32>
    tpu.vector_store %arg11[%c0_22, %c0_23], %37 {strides = array<i32>} : memref<128x1xf32, #tpu.memory_space<vmem>>, vector<128x1xf32>,
    %c0_i32_24 = arith.constant 0 : i32
    %39 = arith.cmpi eq, %arg1, %c0_i32_24 : i32
    %40 = arith.extui %39 : i1 to i32
    %c0_i32_25 = arith.constant 0 : i32
    %41 = arith.cmpi ne, %40, %c0_i32_25 : i32
    scf.if %41 {
      %c0_26 = arith.constant 0 : index
      %c0_27 = arith.constant 0 : index
      %42 = vector.load %arg9[%c0_26, %c0_27] : memref<128x1xf32, #tpu.memory_space<vmem>>, vector<128x1xf32>
      %c0_28 = arith.constant 0 : index
      %c0_29 = arith.constant 0 : index
      %43 = vector.load %arg10[%c0_28, %c0_29] : memref<128x1xf32, #tpu.memory_space<vmem>>, vector<128x1xf32>
      %44 = math.log %43 : vector<128x1xf32>
      %45 = arith.addf %42, %44 : vector<128x1xf32>
      %c0_30 = arith.constant 0 : index
      %c0_31 = arith.constant 0 : index
      %46 = vector.load %arg11[%c0_30, %c0_31] : memref<128x1xf32, #tpu.memory_space<vmem>>, vector<128x1xf32>
      %47 = arith.subf %45, %46 : vector<128x1xf32>
      %c0_32 = arith.constant 0 : index
      %c0_33 = arith.constant 0 : index
      %48 = vector.load %arg6[%c0_32, %c0_33] : memref<128x1xf32, #tpu.memory_space<vmem>>, vector<128x1xf32>
      %c0_34 = arith.constant 0 : index
      %c0_35 = arith.constant 0 : index
      %49 = vector.load %arg5[%c0_34, %c0_35] : memref<128x1xi32, #tpu.memory_space<vmem>>, vector<128x1xi32>
      %c-1_i32 = arith.constant -1 : i32
      %50 = vector.broadcast %c-1_i32 : i32 to vector<128x1xi32>
      %51 = arith.cmpi ne, %49, %50 : vector<128x1xi32>
      %52 = arith.extui %51 : vector<128x1xi1> to vector<128x1xi32>
      %53 = arith.sitofp %52 : vector<128x1xi32> to vector<128x1xf32>
      %54 = arith.mulf %48, %53 : vector<128x1xf32>
      %55 = arith.mulf %47, %54 : vector<128x1xf32>
      %cst_36 = arith.constant dense<0.000000e+00> : vector<1xf32>
      %56 = vector.multi_reduction <add>, %55, %cst_36 [0] : vector<128x1xf32> to vector<1xf32>
      %57 = vector.shape_cast %56 : vector<1xf32> to vector<1x1xf32>
      %58 = vector.shape_cast %57 : vector<1x1xf32> to vector<1x1x1xf32>
      %59 = vector.broadcast %58 : vector<1x1x1xf32> to vector<1x8x128xf32>
      %c0_37 = arith.constant 0 : index
      %c0_38 = arith.constant 0 : index
      %c0_39 = arith.constant 0 : index
      %60 = vector.load %arg7[%c0_37, %c0_38, %c0_39] : memref<1x8x128xf32, #tpu.memory_space<vmem>>, vector<1x8x128xf32>
      tpu.vector_store %arg7[%c0_37, %c0_38, %c0_39], %59 {strides = array<i32>} : memref<1x8x128xf32, #tpu.memory_space<vmem>>, vector<1x8x128xf32>,
    } else {
    }
    return
  }
  func.func @transform_0(%arg0: i32, %arg1: i32) -> (i32, i32) {
    %c0_i32 = arith.constant 0 : i32
    %c0_i32_0 = arith.constant 0 : i32
    return %arg0, %c0_i32 : i32, i32
  }
  func.func @transform_1(%arg0: i32, %arg1: i32) -> (i32, i32) {
    %c0_i32 = arith.constant 0 : i32
    %c0_i32_0 = arith.constant 0 : i32
    return %c0_i32, %arg1 : i32, i32
  }
  func.func @transform_2(%arg0: i32, %arg1: i32) -> (i32, i32) {
    %c0_i32 = arith.constant 0 : i32
    %c0_i32_0 = arith.constant 0 : i32
    return %c0_i32, %arg1 : i32, i32
  }
  func.func @transform_3(%arg0: i32, %arg1: i32) -> (i32, i32) {
    %c0_i32 = arith.constant 0 : i32
    %c0_i32_0 = arith.constant 0 : i32
    return %arg0, %c0_i32 : i32, i32
  }
  func.func @transform_4(%arg0: i32, %arg1: i32) -> (i32, i32) {
    %c0_i32 = arith.constant 0 : i32
    %c0_i32_0 = arith.constant 0 : i32
    return %arg0, %c0_i32 : i32, i32
  }
  func.func @transform_5(%arg0: i32, %arg1: i32) -> (i32, i32, i32) {
    %c0_i32 = arith.constant 0 : i32
    %c0_i32_0 = arith.constant 0 : i32
    %c0_i32_1 = arith.constant 0 : i32
    return %arg0, %c0_i32, %c0_i32_0 : i32, i32, i32
  }
}

</mosaic_0001>

<llo_original>
// kernel: tpu_custom_call.1
$region0: #{tpu_custom_call.1}
  #allocation0 [shape = 'u32[]', space=smem, size = 0x4, offset = 0x4, fixed_abs, tag = 'smem constant byte address 0x4 - core index']
  #allocation1 [shape = 'u32[144,128]{1,0:T(1,128)}', space=vmem, size = 0x12000, scoped, tag = 'internal scratch']
  #allocation2 [shape = 'bf16[128,32]{1,0:T(8,128)(2,1)}', space=vmem, size = 0x8000, scoped, tag = 'scratch operand']
  #allocation3 [shape = 'f32[128,1]{1,0:T(8,128)}', space=vmem, size = 0x10000, scoped, tag = 'scratch operand']
  #allocation4 [shape = 'f32[128,1]{1,0:T(8,128)}', space=vmem, size = 0x10000, scoped, tag = 'scratch operand']
  #allocation5 [shape = 'f32[128,1]{1,0:T(8,128)}', space=vmem, size = 0x10000, scoped, tag = 'scratch operand']
  %s0 = inlined_call_operand.vmem [shape: f32[128,32], index: 0, kind: input, shape index: {}]
  %s1 = inlined_call_operand.vmem [shape: bf16[32,128], index: 1, kind: input, shape index: {}]
  %s2 = inlined_call_operand.vmem [shape: f32[1,128], index: 2, kind: input, shape index: {}]
  %s3 = inlined_call_operand.vmem [shape: s32[128,1], index: 3, kind: input, shape index: {}]
  %s4 = inlined_call_operand.vmem [shape: f32[128,1], index: 4, kind: input, shape index: {}]
  %s5 = inlined_call_operand.hbm [shape: f32[1,8,128], index: 5, kind: output, shape index: {}]
  %s6 = sld [smem:[#allocation0]]
  $region38: #{tpu_custom_call.1} parent=0
    _
  %s8 = ssub.s32 1, %s6
  %s9 = scalar_select 0, %s8, %s6
  $region1: #{tpu_custom_call.1} parent=0
    #allocation6 [shape = 'u8[4096]{0}', space=vmem, size = 0x1000, scoped, tag = 'output window, operand 0, single buffered']
    #allocation7 [shape = 's32[1]{0}', space=sflag, size = 0x4, scoped, tag = 'scoped memory for tpu_custom_call.1']
    %10 = vsyncpa [#allocation7], 0
    // Predicated region
    $region2: #{tpu_custom_call.1} parent=1 // pred_check
      _
    $region3: #{tpu_custom_call.1} parent=1 // pred_check_branch
      %12 = sbr.rel (0) target = $region5
    $region4: #{tpu_custom_call.1} parent=1 // pred_region
      _
    $region5: #{tpu_custom_call.1} parent=1 // pred_fallthru
      _
    // Predicated region
    $region6: #{tpu_custom_call.1} parent=1 // pred_check
      _
    $region7: #{tpu_custom_call.1} parent=1 // pred_check_branch
      %14 = sbr.rel (0) target = $region9
    $region8: #{tpu_custom_call.1} parent=1 // pred_region
      _
    $region9: #{tpu_custom_call.1} parent=1 // pred_fallthru
      _
    // Predicated region
    $region10: #{tpu_custom_call.1} parent=1 // pred_check
      _
    $region11: #{tpu_custom_call.1} parent=1 // pred_check_branch
      %16 = sbr.rel (0) target = $region13
    $region12: #{tpu_custom_call.1} parent=1 // pred_region
      _
    $region13: #{tpu_custom_call.1} parent=1 // pred_fallthru
      _
    // Predicated region
    $region14: #{tpu_custom_call.1} parent=1 // pred_check
      _
    $region15: #{tpu_custom_call.1} parent=1 // pred_check_branch
      %18 = sbr.rel (0) target = $region17
    $region16: #{tpu_custom_call.1} parent=1 // pred_region
      _
    $region17: #{tpu_custom_call.1} parent=1 // pred_fallthru
      _
    // Predicated region
    $region18: #{tpu_custom_call.1} parent=1 // pred_check
      _
    $region19: #{tpu_custom_call.1} parent=1 // pred_check_branch
      %20 = sbr.rel (0) target = $region21
    $region20: #{tpu_custom_call.1} parent=1 // pred_region
      _
    $region21: #{tpu_custom_call.1} parent=1 // pred_fallthru
      _
    %p22 = scmp.eq.s32.totalorder 0, 0
    // Predicated region
    $region22: #{tpu_custom_call.1} parent=1 // pred_check
      %p23 = pneg %p22
    $region23: #{tpu_custom_call.1} parent=1 // pred_check_branch
      %25 = sbr.rel (%p23) target = $region25
    $region24: #{tpu_custom_call.1} parent=1 // pred_region
      %v26 = vld [vmem:[%s0] sm:$0xff]
      %v27 = vld [vmem:[%s0 + $0x8] sm:$0xff]
      %v28 = vld [vmem:[%s0 + $0x10] sm:$0xff]
      %v29 = vld [vmem:[%s0 + $0x18] sm:$0xff]
      %v30 = vld [vmem:[%s0 + $0x20] sm:$0xff]
      %v31 = vld [vmem:[%s0 + $0x28] sm:$0xff]
      %v32 = vld [vmem:[%s0 + $0x30] sm:$0xff]
      %v33 = vld [vmem:[%s0 + $0x38] sm:$0xff]
      %v34 = vld [vmem:[%s0 + $0x40] sm:$0xff]
      %v35 = vld [vmem:[%s0 + $0x48] sm:$0xff]
      %v36 = vld [vmem:[%s0 + $0x50] sm:$0xff]
      %v37 = vld [vmem:[%s0 + $0x58] sm:$0xff]
      %v38 = vld [vmem:[%s0 + $0x60] sm:$0xff]
      %v39 = vld [vmem:[%s0 + $0x68] sm:$0xff]
      %v40 = vld [vmem:[%s0 + $0x70] sm:$0xff]
      %v41 = vld [vmem:[%s0 + $0x78] sm:$0xff]
      %v42 = vmul.f32 %v26, %v26
      %v43 = vmul.f32 %v27, %v27
      %v44 = vmul.f32 %v28, %v28
      %v45 = vmul.f32 %v29, %v29
      %v46 = vmul.f32 %v30, %v30
      %v47 = vmul.f32 %v31, %v31
      %v48 = vmul.f32 %v32, %v32
      %v49 = vmul.f32 %v33, %v33
      %v50 = vmul.f32 %v34, %v34
      %v51 = vmul.f32 %v35, %v35
      %v52 = vmul.f32 %v36, %v36
      %v53 = vmul.f32 %v37, %v37
      %v54 = vmul.f32 %v38, %v38
      %v55 = vmul.f32 %v39, %v39
      %v56 = vmul.f32 %v40, %v40
      %v57 = vmul.f32 %v41, %v41
      %vm58 = vcmask 261120
      %v59 = vsel %vm58, %v42, 0.0
      %60 = vadd.xlane.f32.xlu0 %v59
      %v61 = vpop.xlane.xlu0 %60
      %v62 = vsel %vm58, %v43, 0.0
      %63 = vadd.xlane.f32.xlu0 %v62
      %v64 = vpop.xlane.xlu0 %63
      %v65 = vsel %vm58, %v44, 0.0
      %66 = vadd.xlane.f32.xlu0 %v65
      %v67 = vpop.xlane.xlu0 %66
      %v68 = vsel %vm58, %v45, 0.0
      %69 = vadd.xlane.f32.xlu0 %v68
      %v70 = vpop.xlane.xlu0 %69
      %v71 = vsel %vm58, %v46, 0.0
      %72 = vadd.xlane.f32.xlu0 %v71
      %v73 = vpop.xlane.xlu0 %72
      %v74 = vsel %vm58, %v47, 0.0
      %75 = vadd.xlane.f32.xlu0 %v74
      %v76 = vpop.xlane.xlu0 %75
      %v77 = vsel %vm58, %v48, 0.0
      %78 = vadd.xlane.f32.xlu0 %v77
      %v79 = vpop.xlane.xlu0 %78
      %v80 = vsel %vm58, %v49, 0.0
      %81 = vadd.xlane.f32.xlu0 %v80
      %v82 = vpop.xlane.xlu0 %81
      %v83 = vsel %vm58, %v50, 0.0
      %84 = vadd.xlane.f32.xlu0 %v83
      %v85 = vpop.xlane.xlu0 %84
      %v86 = vsel %vm58, %v51, 0.0
      %87 = vadd.xlane.f32.xlu0 %v86
      %v88 = vpop.xlane.xlu0 %87
      %v89 = vsel %vm58, %v52, 0.0
      %90 = vadd.xlane.f32.xlu0 %v89
      %v91 = vpop.xlane.xlu0 %90
      %v92 = vsel %vm58, %v53, 0.0
      %93 = vadd.xlane.f32.xlu0 %v92
      %v94 = vpop.xlane.xlu0 %93
      %v95 = vsel %vm58, %v54, 0.0
      %96 = vadd.xlane.f32.xlu0 %v95
      %v97 = vpop.xlane.xlu0 %96
      %v98 = vsel %vm58, %v55, 0.0
      %99 = vadd.xlane.f32.xlu0 %v98
      %v100 = vpop.xlane.xlu0 %99
      %v101 = vsel %vm58, %v56, 0.0
      %102 = vadd.xlane.f32.xlu0 %v101
      %v103 = vpop.xlane.xlu0 %102
      %v104 = vsel %vm58, %v57, 0.0
      %105 = vadd.xlane.f32.xlu0 %v104
      %v106 = vpop.xlane.xlu0 %105
      %v107 = vmax.f32 %v61, 1e-24
      %v108 = vmax.f32 %v64, 1e-24
      %v109 = vmax.f32 %v67, 1e-24
      %v110 = vmax.f32 %v70, 1e-24
      %v111 = vmax.f32 %v73, 1e-24
      %v112 = vmax.f32 %v76, 1e-24
      %v113 = vmax.f32 %v79, 1e-24
      %v114 = vmax.f32 %v82, 1e-24
      %v115 = vmax.f32 %v85, 1e-24
      %v116 = vmax.f32 %v88, 1e-24
      %v117 = vmax.f32 %v91, 1e-24
      %v118 = vmax.f32 %v94, 1e-24
      %v119 = vmax.f32 %v97, 1e-24
      %v120 = vmax.f32 %v100, 1e-24
      %v121 = vmax.f32 %v103, 1e-24
      %v122 = vmax.f32 %v106, 1e-24
      %v123 = vrsqrt.pop %v107
      %v124 = vrsqrt.pop %v108
      %v125 = vrsqrt.pop %v109
      %v126 = vrsqrt.pop %v110
      %v127 = vrsqrt.pop %v111
      %v128 = vrsqrt.pop %v112
      %v129 = vrsqrt.pop %v113
      %v130 = vrsqrt.pop %v114
      %v131 = vrsqrt.pop %v115
      %v132 = vrsqrt.pop %v116
      %v133 = vrsqrt.pop %v117
      %v134 = vrsqrt.pop %v118
      %v135 = vrsqrt.pop %v119
      %v136 = vrsqrt.pop %v120
      %v137 = vrsqrt.pop %v121
      %v138 = vrsqrt.pop %v122
      %v139 = vmul.f32 %v123, 4.8563914
      %v140 = vmul.f32 %v124, 4.8563914
      %v141 = vmul.f32 %v125, 4.8563914
      %v142 = vmul.f32 %v126, 4.8563914
      %v143 = vmul.f32 %v127, 4.8563914
      %v144 = vmul.f32 %v128, 4.8563914
      %v145 = vmul.f32 %v129, 4.8563914
      %v146 = vmul.f32 %v130, 4.8563914
      %v147 = vmul.f32 %v131, 4.8563914
      %v148 = vmul.f32 %v132, 4.8563914
      %v149 = vmul.f32 %v133, 4.8563914
      %v150 = vmul.f32 %v134, 4.8563914
      %v151 = vmul.f32 %v135, 4.8563914
      %v152 = vmul.f32 %v136, 4.8563914
      %v153 = vmul.f32 %v137, 4.8563914
      %v154 = vmul.f32 %v138, 4.8563914
      %v155 = vmul.f32 %v26, %v139
      %v156 = vmul.f32 %v27, %v140
      %v157 = vmul.f32 %v28, %v141
      %v158 = vmul.f32 %v29, %v142
      %v159 = vmul.f32 %v30, %v143
      %v160 = vmul.f32 %v31, %v144
      %v161 = vmul.f32 %v32, %v145
      %v162 = vmul.f32 %v33, %v146
      %v163 = vmul.f32 %v34, %v147
      %v164 = vmul.f32 %v35, %v148
      %v165 = vmul.f32 %v36, %v149
      %v166 = vmul.f32 %v37, %v150
      %v167 = vmul.f32 %v38, %v151
      %v168 = vmul.f32 %v39, %v152
      %v169 = vmul.f32 %v40, %v153
      %v170 = vmul.f32 %v41, %v154
      %v171 = vpack.c.bf16 %v156, %v155
      %v172 = vpack.c.bf16 %v158, %v157
      %v173 = vpack.c.bf16 %v160, %v159
      %v174 = vpack.c.bf16 %v162, %v161
      %v175 = vpack.c.bf16 %v164, %v163
      %v176 = vpack.c.bf16 %v166, %v165
      %v177 = vpack.c.bf16 %v168, %v167
      %v178 = vpack.c.bf16 %v170, %v169
      %v187 = vunpack.c.l.b16 %v171
      %v188 = vunpack.c.h.b16 %v171
      %v189 = vunpack.c.l.b16 %v172
      %v190 = vunpack.c.h.b16 %v172
      %v191 = vunpack.c.l.b16 %v173
      %v192 = vunpack.c.h.b16 %v173
      %v193 = vunpack.c.l.b16 %v174
      %v194 = vunpack.c.h.b16 %v174
      %v195 = vunpack.c.l.b16 %v175
      %v196 = vunpack.c.h.b16 %v175
      %v197 = vunpack.c.l.b16 %v176
      %v198 = vunpack.c.h.b16 %v176
      %v199 = vunpack.c.l.b16 %v177
      %v200 = vunpack.c.h.b16 %v177
      %v201 = vunpack.c.l.b16 %v178
      %v202 = vunpack.c.h.b16 %v178
      %v203 = vpack.c.b16 %v187, %v187
      %v204 = vpack.c.b16 %v188, %v188
      %v205 = vpack.c.b16 %v189, %v189
      %v206 = vpack.c.b16 %v190, %v190
      %v207 = vpack.c.b16 %v191, %v191
      %v208 = vpack.c.b16 %v192, %v192
      %v209 = vpack.c.b16 %v193, %v193
      %v210 = vpack.c.b16 %v194, %v194
      %v211 = vpack.c.b16 %v195, %v195
      %v212 = vpack.c.b16 %v196, %v196
      %v213 = vpack.c.b16 %v197, %v197
      %v214 = vpack.c.b16 %v198, %v198
      %v215 = vpack.c.b16 %v199, %v199
      %v216 = vpack.c.b16 %v200, %v200
      %v217 = vpack.c.b16 %v201, %v201
      %v218 = vpack.c.b16 %v202, %v202
      %vm235 = vcmask 257024
      %236 = vst.msk [vmem:[#allocation2] sm:$0xf] %vm235, %v203
      %237 = vst.msk [vmem:[#allocation2 + $0x4] sm:$0xf] %vm235, %v204
      %238 = vst.msk [vmem:[#allocation2 + $0x8] sm:$0xf] %vm235, %v205
      %239 = vst.msk [vmem:[#allocation2 + $0xc] sm:$0xf] %vm235, %v206
      %240 = vst.msk [vmem:[#allocation2 + $0x10] sm:$0xf] %vm235, %v207
      %241 = vst.msk [vmem:[#allocation2 + $0x14] sm:$0xf] %vm235, %v208
      %242 = vst.msk [vmem:[#allocation2 + $0x18] sm:$0xf] %vm235, %v209
      %243 = vst.msk [vmem:[#allocation2 + $0x1c] sm:$0xf] %vm235, %v210
      %244 = vst.msk [vmem:[#allocation2 + $0x20] sm:$0xf] %vm235, %v211
      %245 = vst.msk [vmem:[#allocation2 + $0x24] sm:$0xf] %vm235, %v212
      %246 = vst.msk [vmem:[#allocation2 + $0x28] sm:$0xf] %vm235, %v213
      %247 = vst.msk [vmem:[#allocation2 + $0x2c] sm:$0xf] %vm235, %v214
      %248 = vst.msk [vmem:[#allocation2 + $0x30] sm:$0xf] %vm235, %v215
      %249 = vst.msk [vmem:[#allocation2 + $0x34] sm:$0xf] %vm235, %v216
      %250 = vst.msk [vmem:[#allocation2 + $0x38] sm:$0xf] %vm235, %v217
      %251 = vst.msk [vmem:[#allocation2 + $0x3c] sm:$0xf] %vm235, %v218
      %vm252 = vcmask 7168
      %253 = vst.msk [vmem:[#allocation3] sm:$0xff] %vm252, -1e+30
      %254 = vst.msk [vmem:[#allocation3 + $0x8] sm:$0xff] %vm252, -1e+30
      %255 = vst.msk [vmem:[#allocation3 + $0x10] sm:$0xff] %vm252, -1e+30
      %256 = vst.msk [vmem:[#allocation3 + $0x18] sm:$0xff] %vm252, -1e+30
      %257 = vst.msk [vmem:[#allocation3 + $0x20] sm:$0xff] %vm252, -1e+30
      %258 = vst.msk [vmem:[#allocation3 + $0x28] sm:$0xff] %vm252, -1e+30
      %259 = vst.msk [vmem:[#allocation3 + $0x30] sm:$0xff] %vm252, -1e+30
      %260 = vst.msk [vmem:[#allocation3 + $0x38] sm:$0xff] %vm252, -1e+30
      %261 = vst.msk [vmem:[#allocation3 + $0x40] sm:$0xff] %vm252, -1e+30
      %262 = vst.msk [vmem:[#allocation3 + $0x48] sm:$0xff] %vm252, -1e+30
      %263 = vst.msk [vmem:[#allocation3 + $0x50] sm:$0xff] %vm252, -1e+30
      %264 = vst.msk [vmem:[#allocation3 + $0x58] sm:$0xff] %vm252, -1e+30
      %265 = vst.msk [vmem:[#allocation3 + $0x60] sm:$0xff] %vm252, -1e+30
      %266 = vst.msk [vmem:[#allocation3 + $0x68] sm:$0xff] %vm252, -1e+30
      %267 = vst.msk [vmem:[#allocation3 + $0x70] sm:$0xff] %vm252, -1e+30
      %268 = vst.msk [vmem:[#allocation3 + $0x78] sm:$0xff] %vm252, -1e+30
      %269 = vst.msk [vmem:[#allocation4] sm:$0xff] %vm252, 0.0
      %270 = vst.msk [vmem:[#allocation4 + $0x8] sm:$0xff] %vm252, 0.0
      %271 = vst.msk [vmem:[#allocation4 + $0x10] sm:$0xff] %vm252, 0.0
      %272 = vst.msk [vmem:[#allocation4 + $0x18] sm:$0xff] %vm252, 0.0
      %273 = vst.msk [vmem:[#allocation4 + $0x20] sm:$0xff] %vm252, 0.0
      %274 = vst.msk [vmem:[#allocation4 + $0x28] sm:$0xff] %vm252, 0.0
      %275 = vst.msk [vmem:[#allocation4 + $0x30] sm:$0xff] %vm252, 0.0
      %276 = vst.msk [vmem:[#allocation4 + $0x38] sm:$0xff] %vm252, 0.0
      %277 = vst.msk [vmem:[#allocation4 + $0x40] sm:$0xff] %vm252, 0.0
      %278 = vst.msk [vmem:[#allocation4 + $0x48] sm:$0xff] %vm252, 0.0
      %279 = vst.msk [vmem:[#allocation4 + $0x50] sm:$0xff] %vm252, 0.0
      %280 = vst.msk [vmem:[#allocation4 + $0x58] sm:$0xff] %vm252, 0.0
      %281 = vst.msk [vmem:[#allocation4 + $0x60] sm:$0xff] %vm252, 0.0
      %282 = vst.msk [vmem:[#allocation4 + $0x68] sm:$0xff] %vm252, 0.0
      %283 = vst.msk [vmem:[#allocation4 + $0x70] sm:$0xff] %vm252, 0.0
      %284 = vst.msk [vmem:[#allocation4 + $0x78] sm:$0xff] %vm252, 0.0
      %285 = vst.msk [vmem:[#allocation5] sm:$0xff] %vm252, 0.0
      %286 = vst.msk [vmem:[#allocation5 + $0x8] sm:$0xff] %vm252, 0.0
      %287 = vst.msk [vmem:[#allocation5 + $0x10] sm:$0xff] %vm252, 0.0
      %288 = vst.msk [vmem:[#allocation5 + $0x18] sm:$0xff] %vm252, 0.0
      %289 = vst.msk [vmem:[#allocation5 + $0x20] sm:$0xff] %vm252, 0.0
      %290 = vst.msk [vmem:[#allocation5 + $0x28] sm:$0xff] %vm252, 0.0
      %291 = vst.msk [vmem:[#allocation5 + $0x30] sm:$0xff] %vm252, 0.0
      %292 = vst.msk [vmem:[#allocation5 + $0x38] sm:$0xff] %vm252, 0.0
      %293 = vst.msk [vmem:[#allocation5 + $0x40] sm:$0xff] %vm252, 0.0
      %294 = vst.msk [vmem:[#allocation5 + $0x48] sm:$0xff] %vm252, 0.0
      %295 = vst.msk [vmem:[#allocation5 + $0x50] sm:$0xff] %vm252, 0.0
      %296 = vst.msk [vmem:[#allocation5 + $0x58] sm:$0xff] %vm252, 0.0
      %297 = vst.msk [vmem:[#allocation5 + $0x60] sm:$0xff] %vm252, 0.0
      %298 = vst.msk [vmem:[#allocation5 + $0x68] sm:$0xff] %vm252, 0.0
      %299 = vst.msk [vmem:[#allocation5 + $0x70] sm:$0xff] %vm252, 0.0
      %300 = vst.msk [vmem:[#allocation5 + $0x78] sm:$0xff] %vm252, 0.0
    $region25: #{tpu_custom_call.1} parent=1 // pred_fallthru
      _
    %v301 = vld [vmem:[#allocation2] sm:$0xf]
    %v302 = vld [vmem:[#allocation2 + $0x4] sm:$0xf]
    %v303 = vld [vmem:[#allocation2 + $0x8] sm:$0xf]
    %v304 = vld [vmem:[#allocation2 + $0xc] sm:$0xf]
    %v305 = vld [vmem:[#allocation2 + $0x10] sm:$0xf]
    %v306 = vld [vmem:[#allocation2 + $0x14] sm:$0xf]
    %v307 = vld [vmem:[#allocation2 + $0x18] sm:$0xf]
    %v308 = vld [vmem:[#allocation2 + $0x1c] sm:$0xf]
    %v309 = vld [vmem:[#allocation2 + $0x20] sm:$0xf]
    %v310 = vld [vmem:[#allocation2 + $0x24] sm:$0xf]
    %v311 = vld [vmem:[#allocation2 + $0x28] sm:$0xf]
    %v312 = vld [vmem:[#allocation2 + $0x2c] sm:$0xf]
    %v313 = vld [vmem:[#allocation2 + $0x30] sm:$0xf]
    %v314 = vld [vmem:[#allocation2 + $0x34] sm:$0xf]
    %v315 = vld [vmem:[#allocation2 + $0x38] sm:$0xf]
    %v316 = vld [vmem:[#allocation2 + $0x3c] sm:$0xf]
    %v317 = vld [vmem:[%s1] sm:$0xf]
    %v318 = vld [vmem:[%s1 + $0x4] sm:$0xf]
    %v319 = vld [vmem:[%s1 + $0x8] sm:$0xf]
    %v320 = vld [vmem:[%s1 + $0xc] sm:$0xf]
    %v321 = vld [vmem:[%s2] sm:$0x1]
    %v323 = vlaneseq
    %v324 = vshrl.u32 %v323, 7
    %v325 = vsub.s32 0, %v324
    %v326 = vrot.slane %v321, %v325
    %v344 = vunpack.c.l.b16 %v301
    %v345 = vunpack.c.l.b16 %v302
    %v346 = vunpack.c.l.b16 %v303
    %v347 = vunpack.c.l.b16 %v304
    %v348 = vunpack.c.l.b16 %v305
    %v349 = vunpack.c.l.b16 %v306
    %v350 = vunpack.c.l.b16 %v307
    %v351 = vunpack.c.l.b16 %v308
    %v352 = vunpack.c.l.b16 %v309
    %v353 = vunpack.c.l.b16 %v310
    %v354 = vunpack.c.l.b16 %v311
    %v355 = vunpack.c.l.b16 %v312
    %v356 = vunpack.c.l.b16 %v313
    %v357 = vunpack.c.l.b16 %v314
    %v358 = vunpack.c.l.b16 %v315
    %v359 = vunpack.c.l.b16 %v316
    %v360 = vpack.c.b16 %v345, %v344
    %v361 = vpack.c.b16 %v347, %v346
    %v362 = vpack.c.b16 %v349, %v348
    %v363 = vpack.c.b16 %v351, %v350
    %v364 = vpack.c.b16 %v353, %v352
    %v365 = vpack.c.b16 %v355, %v354
    %v366 = vpack.c.b16 %v357, %v356
    %v367 = vpack.c.b16 %v359, %v358
    %v372 = vunpack.c.l.b16 %v317
    %v373 = vunpack.c.l.b16 %v318
    %v374 = vunpack.c.l.b16 %v319
    %v375 = vunpack.c.l.b16 %v320
    %v376 = vpack.c.b16 %v373, %v372
    %v377 = vpack.c.b16 %v375, %v374
    %vm380 = vcmask 261120
    %v382 = vsel %vm380, %v360, 0
    %v385 = vsel %vm380, %v361, 0
    %v388 = vsel %vm380, %v362, 0
    %v391 = vsel %vm380, %v363, 0
    %v394 = vsel %vm380, %v364, 0
    %v397 = vsel %vm380, %v365, 0
    %v400 = vsel %vm380, %v366, 0
    %v403 = vsel %vm380, %v367, 0
    %405 = vmatprep.subr.bf16.mxu0 0
    %406 = vmatpush1.bf16.msra.mxu0 0
    %407 = vmatprep.subr.bf16.mxu0 0
    %408 = vmatpush1.bf16.msra.mxu0 0
    %409 = vmatprep.subr.bf16.mxu0 0
    %410 = vmatpush1.bf16.msra.mxu0 0
    %411 = vmatprep.subr.bf16.mxu0 0
    %412 = vmatpush1.bf16.msra.mxu0 0
    %413 = vmatprep.subr.bf16.mxu0 0
    %414 = vmatpush1.bf16.msra.mxu0 0
    %415 = vmatprep.subr.bf16.mxu0 0
    %416 = vmatpush1.bf16.msra.mxu0 0
    %417 = vmatprep.subr.bf16.mxu0 0
    %418 = vmatpush1.bf16.msra.mxu0 %v377
    %419 = vmatprep.subr.bf16.mxu0 0
    %420 = vmatpush1.bf16.msra.mxu0 %v376
    %421 = vmatprep.subr.bf16.mxu0 0
    %422 = vmatpush2.bf16.msra.mxu0 0
    %423 = vmatprep.subr.bf16.mxu0 0
    %424 = vmatpush2.bf16.msra.mxu0 0
    %425 = vmatprep.subr.bf16.mxu0 0
    %426 = vmatpush2.bf16.msra.mxu0 0
    %427 = vmatprep.subr.bf16.mxu0 0
    %428 = vmatpush2.bf16.msra.mxu0 0
    %429 = vmatprep.subr.bf16.mxu0 0
    %430 = vmatpush2.bf16.msra.mxu0 0
    %431 = vmatprep.subr.bf16.mxu0 0
    %432 = vmatpush2.bf16.msra.mxu0 0
    %433 = vmatprep.subr.bf16.mxu0 0
    %434 = vmatpush2.bf16.msra.mxu0 0
    %435 = vmatprep.subr.bf16.mxu0 0
    %436 = vmatpush2.bf16.msra.mxu0 0
    %437 = vmatprep.mubr.bf16.mxu0 0
    %438 = vmatmul.mubr.bf16.gmra.mxu0 %v382
    %v439 = vpop.f32.mrf.mxu0
    %v440 = vadd.f32 %v326, %v439
    %v441 = vpop.f32.mrf.mxu0
    %v442 = vpop.f32.mrf.mxu0
    %v443 = vadd.f32 %v326, %v442
    %v444 = vpop.f32.mrf.mxu0
    %445 = vmatprep.mubr.bf16.mxu0 0
    %446 = vmatmul.mubr.bf16.gmra.mxu0 %v385
    %v447 = vpop.f32.mrf.mxu0
    %v448 = vadd.f32 %v326, %v447
    %v449 = vpop.f32.mrf.mxu0
    %v450 = vpop.f32.mrf.mxu0
    %v451 = vadd.f32 %v326, %v450
    %v452 = vpop.f32.mrf.mxu0
    %453 = vmatprep.mubr.bf16.mxu0 0
    %454 = vmatmul.mubr.bf16.gmra.mxu0 %v388
    %v455 = vpop.f32.mrf.mxu0
    %v456 = vadd.f32 %v326, %v455
    %v457 = vpop.f32.mrf.mxu0
    %v458 = vpop.f32.mrf.mxu0
    %v459 = vadd.f32 %v326, %v458
    %v460 = vpop.f32.mrf.mxu0
    %461 = vmatprep.mubr.bf16.mxu0 0
    %462 = vmatmul.mubr.bf16.gmra.mxu0 %v391
    %v463 = vpop.f32.mrf.mxu0
    %v464 = vadd.f32 %v326, %v463
    %v465 = vpop.f32.mrf.mxu0
    %v466 = vpop.f32.mrf.mxu0
    %v467 = vadd.f32 %v326, %v466
    %v468 = vpop.f32.mrf.mxu0
    %469 = vmatprep.mubr.bf16.mxu0 0
    %470 = vmatmul.mubr.bf16.gmra.mxu0 %v394
    %v471 = vpop.f32.mrf.mxu0
    %v472 = vadd.f32 %v326, %v471
    %v473 = vpop.f32.mrf.mxu0
    %v474 = vpop.f32.mrf.mxu0
    %v475 = vadd.f32 %v326, %v474
    %v476 = vpop.f32.mrf.mxu0
    %477 = vmatprep.mubr.bf16.mxu0 0
    %478 = vmatmul.mubr.bf16.gmra.mxu0 %v397
    %v479 = vpop.f32.mrf.mxu0
    %v480 = vadd.f32 %v326, %v479
    %v481 = vpop.f32.mrf.mxu0
    %v482 = vpop.f32.mrf.mxu0
    %v483 = vadd.f32 %v326, %v482
    %v484 = vpop.f32.mrf.mxu0
    %485 = vmatprep.mubr.bf16.mxu0 0
    %486 = vmatmul.mubr.bf16.gmra.mxu0 %v400
    %v487 = vpop.f32.mrf.mxu0
    %v488 = vadd.f32 %v326, %v487
    %v489 = vpop.f32.mrf.mxu0
    %v490 = vpop.f32.mrf.mxu0
    %v491 = vadd.f32 %v326, %v490
    %v492 = vpop.f32.mrf.mxu0
    %493 = vmatprep.mubr.bf16.mxu0 0
    %494 = vmatmul.mubr.bf16.gmra.mxu0 %v403
    %v495 = vpop.f32.mrf.mxu0
    %v496 = vadd.f32 %v326, %v495
    %v497 = vpop.f32.mrf.mxu0
    %v498 = vpop.f32.mrf.mxu0
    %v499 = vadd.f32 %v326, %v498
    %v500 = vpop.f32.mrf.mxu0
    %501 = vdwg.mxu0
    %v502 = vld [vmem:[#allocation3] sm:$0xff]
    %v503 = vld [vmem:[#allocation3 + $0x8] sm:$0xff]
    %v504 = vld [vmem:[#allocation3 + $0x10] sm:$0xff]
    %v505 = vld [vmem:[#allocation3 + $0x18] sm:$0xff]
    %v506 = vld [vmem:[#allocation3 + $0x20] sm:$0xff]
    %v507 = vld [vmem:[#allocation3 + $0x28] sm:$0xff]
    %v508 = vld [vmem:[#allocation3 + $0x30] sm:$0xff]
    %v509 = vld [vmem:[#allocation3 + $0x38] sm:$0xff]
    %v510 = vld [vmem:[#allocation3 + $0x40] sm:$0xff]
    %v511 = vld [vmem:[#allocation3 + $0x48] sm:$0xff]
    %v512 = vld [vmem:[#allocation3 + $0x50] sm:$0xff]
    %v513 = vld [vmem:[#allocation3 + $0x58] sm:$0xff]
    %v514 = vld [vmem:[#allocation3 + $0x60] sm:$0xff]
    %v515 = vld [vmem:[#allocation3 + $0x68] sm:$0xff]
    %v516 = vld [vmem:[#allocation3 + $0x70] sm:$0xff]
    %v517 = vld [vmem:[#allocation3 + $0x78] sm:$0xff]
    %518 = vmax.xlane.f32.xlu0 %v440
    %v519 = vpop.xlane.xlu0 %518
    %520 = vmax.xlane.f32.xlu0 %v443
    %v521 = vpop.xlane.xlu0 %520
    %522 = vmax.xlane.f32.xlu0 %v448
    %v523 = vpop.xlane.xlu0 %522
    %524 = vmax.xlane.f32.xlu0 %v451
    %v525 = vpop.xlane.xlu0 %524
    %526 = vmax.xlane.f32.xlu0 %v456
    %v527 = vpop.xlane.xlu0 %526
    %528 = vmax.xlane.f32.xlu0 %v459
    %v529 = vpop.xlane.xlu0 %528
    %530 = vmax.xlane.f32.xlu0 %v464
    %v531 = vpop.xlane.xlu0 %530
    %532 = vmax.xlane.f32.xlu0 %v467
    %v533 = vpop.xlane.xlu0 %532
    %534 = vmax.xlane.f32.xlu0 %v472
    %v535 = vpop.xlane.xlu0 %534
    %536 = vmax.xlane.f32.xlu0 %v475
    %v537 = vpop.xlane.xlu0 %536
    %538 = vmax.xlane.f32.xlu0 %v480
    %v539 = vpop.xlane.xlu0 %538
    %540 = vmax.xlane.f32.xlu0 %v483
    %v541 = vpop.xlane.xlu0 %540
    %542 = vmax.xlane.f32.xlu0 %v488
    %v543 = vpop.xlane.xlu0 %542
    %544 = vmax.xlane.f32.xlu0 %v491
    %v545 = vpop.xlane.xlu0 %544
    %546 = vmax.xlane.f32.xlu0 %v496
    %v547 = vpop.xlane.xlu0 %546
    %548 = vmax.xlane.f32.xlu0 %v499
    %v549 = vpop.xlane.xlu0 %548
    %v550 = vmax.f32 %v502, %v519
    %v551 = vmax.f32 %v503, %v521
    %v552 = vmax.f32 %v504, %v523
    %v553 = vmax.f32 %v505, %v525
    %v554 = vmax.f32 %v506, %v527
    %v555 = vmax.f32 %v507, %v529
    %v556 = vmax.f32 %v508, %v531
    %v557 = vmax.f32 %v509, %v533
    %v558 = vmax.f32 %v510, %v535
    %v559 = vmax.f32 %v511, %v537
    %v560 = vmax.f32 %v512, %v539
    %v561 = vmax.f32 %v513, %v541
    %v562 = vmax.f32 %v514, %v543
    %v563 = vmax.f32 %v515, %v545
    %v564 = vmax.f32 %v516, %v547
    %v565 = vmax.f32 %v517, %v549
    %v566 = vsub.f32 %v502, %v550
    %v567 = vsub.f32 %v503, %v551
    %v568 = vsub.f32 %v504, %v552
    %v569 = vsub.f32 %v505, %v553
    %v570 = vsub.f32 %v506, %v554
    %v571 = vsub.f32 %v507, %v555
    %v572 = vsub.f32 %v508, %v556
    %v573 = vsub.f32 %v509, %v557
    %v574 = vsub.f32 %v510, %v558
    %v575 = vsub.f32 %v511, %v559
    %v576 = vsub.f32 %v512, %v560
    %v577 = vsub.f32 %v513, %v561
    %v578 = vsub.f32 %v514, %v562
    %v579 = vsub.f32 %v515, %v563
    %v580 = vsub.f32 %v516, %v564
    %v581 = vsub.f32 %v517, %v565
    %v582 = vmul.f32 %v566, 1.442695
    %v583 = vpow.pop %v582
    %v584 = vmul.f32 %v567, 1.442695
    %v585 = vpow.pop %v584
    %v586 = vmul.f32 %v568, 1.442695
    %v587 = vpow.pop %v586
    %v588 = vmul.f32 %v569, 1.442695
    %v589 = vpow.pop %v588
    %v590 = vmul.f32 %v570, 1.442695
    %v591 = vpow.pop %v590
    %v592 = vmul.f32 %v571, 1.442695
    %v593 = vpow.pop %v592
    %v594 = vmul.f32 %v572, 1.442695
    %v595 = vpow.pop %v594
    %v596 = vmul.f32 %v573, 1.442695
    %v597 = vpow.pop %v596
    %v598 = vmul.f32 %v574, 1.442695
    %v599 = vpow.pop %v598
    %v600 = vmul.f32 %v575, 1.442695
    %v601 = vpow.pop %v600
    %v602 = vmul.f32 %v576, 1.442695
    %v603 = vpow.pop %v602
    %v604 = vmul.f32 %v577, 1.442695
    %v605 = vpow.pop %v604
    %v606 = vmul.f32 %v578, 1.442695
    %v607 = vpow.pop %v606
    %v608 = vmul.f32 %v579, 1.442695
    %v609 = vpow.pop %v608
    %v610 = vmul.f32 %v580, 1.442695
    %v611 = vpow.pop %v610
    %v612 = vmul.f32 %v581, 1.442695
    %v613 = vpow.pop %v612
    %615 = vset.pattern.permute.xlu0 0
    %616 = vperm.xlu0 %615, %v550
    %v617 = vpop.permute.xlu0 %616
    %620 = vset.pattern.permute.xlu0 0
    %621 = vperm.xlu0 %620, %v551
    %v622 = vpop.permute.xlu0 %621
    %625 = vset.pattern.permute.xlu0 0
    %626 = vperm.xlu0 %625, %v552
    %v627 = vpop.permute.xlu0 %626
    %630 = vset.pattern.permute.xlu0 0
    %631 = vperm.xlu0 %630, %v553
    %v632 = vpop.permute.xlu0 %631
    %635 = vset.pattern.permute.xlu0 0
    %636 = vperm.xlu0 %635, %v554
    %v637 = vpop.permute.xlu0 %636
    %640 = vset.pattern.permute.xlu0 0
    %641 = vperm.xlu0 %640, %v555
    %v642 = vpop.permute.xlu0 %641
    %645 = vset.pattern.permute.xlu0 0
    %646 = vperm.xlu0 %645, %v556
    %v647 = vpop.permute.xlu0 %646
    %650 = vset.pattern.permute.xlu0 0
    %651 = vperm.xlu0 %650, %v557
    %v652 = vpop.permute.xlu0 %651
    %655 = vset.pattern.permute.xlu0 0
    %656 = vperm.xlu0 %655, %v558
    %v657 = vpop.permute.xlu0 %656
    %660 = vset.pattern.permute.xlu0 0
    %661 = vperm.xlu0 %660, %v559
    %v662 = vpop.permute.xlu0 %661
    %665 = vset.pattern.permute.xlu0 0
    %666 = vperm.xlu0 %665, %v560
    %v667 = vpop.permute.xlu0 %666
    %670 = vset.pattern.permute.xlu0 0
    %671 = vperm.xlu0 %670, %v561
    %v672 = vpop.permute.xlu0 %671
    %675 = vset.pattern.permute.xlu0 0
    %676 = vperm.xlu0 %675, %v562
    %v677 = vpop.permute.xlu0 %676
    %680 = vset.pattern.permute.xlu0 0
    %681 = vperm.xlu0 %680, %v563
    %v682 = vpop.permute.xlu0 %681
    %685 = vset.pattern.permute.xlu0 0
    %686 = vperm.xlu0 %685, %v564
    %v687 = vpop.permute.xlu0 %686
    %690 = vset.pattern.permute.xlu0 0
    %691 = vperm.xlu0 %690, %v565
    %v692 = vpop.permute.xlu0 %691
    %v694 = vsub.f32 %v440, %v617
    %v695 = vsub.f32 %v443, %v622
    %v696 = vsub.f32 %v448, %v627
    %v697 = vsub.f32 %v451, %v632
    %v698 = vsub.f32 %v456, %v637
    %v699 = vsub.f32 %v459, %v642
    %v700 = vsub.f32 %v464, %v647
    %v701 = vsub.f32 %v467, %v652
    %v702 = vsub.f32 %v472, %v657
    %v703 = vsub.f32 %v475, %v662
    %v704 = vsub.f32 %v480, %v667
    %v705 = vsub.f32 %v483, %v672
    %v706 = vsub.f32 %v488, %v677
    %v707 = vsub.f32 %v491, %v682
    %v708 = vsub.f32 %v496, %v687
    %v709 = vsub.f32 %v499, %v692
    %v710 = vmul.f32 %v694, 1.442695
    %v711 = vpow.pop %v710
    %v712 = vmul.f32 %v695, 1.442695
    %v713 = vpow.pop %v712
    %v714 = vmul.f32 %v696, 1.442695
    %v715 = vpow.pop %v714
    %v716 = vmul.f32 %v697, 1.442695
    %v717 = vpow.pop %v716
    %v718 = vmul.f32 %v698, 1.442695
    %v719 = vpow.pop %v718
    %v720 = vmul.f32 %v699, 1.442695
    %v721 = vpow.pop %v720
    %v722 = vmul.f32 %v700, 1.442695
    %v723 = vpow.pop %v722
    %v724 = vmul.f32 %v701, 1.442695
    %v725 = vpow.pop %v724
    %v726 = vmul.f32 %v702, 1.442695
    %v727 = vpow.pop %v726
    %v728 = vmul.f32 %v703, 1.442695
    %v729 = vpow.pop %v728
    %v730 = vmul.f32 %v704, 1.442695
    %v731 = vpow.pop %v730
    %v732 = vmul.f32 %v705, 1.442695
    %v733 = vpow.pop %v732
    %v734 = vmul.f32 %v706, 1.442695
    %v735 = vpow.pop %v734
    %v736 = vmul.f32 %v707, 1.442695
    %v737 = vpow.pop %v736
    %v738 = vmul.f32 %v708, 1.442695
    %v739 = vpow.pop %v738
    %v740 = vmul.f32 %v709, 1.442695
    %v741 = vpow.pop %v740
    %v742 = vld [vmem:[#allocation4] sm:$0xff]
    %v743 = vld [vmem:[#allocation4 + $0x8] sm:$0xff]
    %v744 = vld [vmem:[#allocation4 + $0x10] sm:$0xff]
    %v745 = vld [vmem:[#allocation4 + $0x18] sm:$0xff]
    %v746 = vld [vmem:[#allocation4 + $0x20] sm:$0xff]
    %v747 = vld [vmem:[#allocation4 + $0x28] sm:$0xff]
    %v748 = vld [vmem:[#allocation4 + $0x30] sm:$0xff]
    %v749 = vld [vmem:[#allocation4 + $0x38] sm:$0xff]
    %v750 = vld [vmem:[#allocation4 + $0x40] sm:$0xff]
    %v751 = vld [vmem:[#allocation4 + $0x48] sm:$0xff]
    %v752 = vld [vmem:[#allocation4 + $0x50] sm:$0xff]
    %v753 = vld [vmem:[#allocation4 + $0x58] sm:$0xff]
    %v754 = vld [vmem:[#allocation4 + $0x60] sm:$0xff]
    %v755 = vld [vmem:[#allocation4 + $0x68] sm:$0xff]
    %v756 = vld [vmem:[#allocation4 + $0x70] sm:$0xff]
    %v757 = vld [vmem:[#allocation4 + $0x78] sm:$0xff]
    %v758 = vmul.f32 %v583, %v742
    %v759 = vmul.f32 %v585, %v743
    %v760 = vmul.f32 %v587, %v744
    %v761 = vmul.f32 %v589, %v745
    %v762 = vmul.f32 %v591, %v746
    %v763 = vmul.f32 %v593, %v747
    %v764 = vmul.f32 %v595, %v748
    %v765 = vmul.f32 %v597, %v749
    %v766 = vmul.f32 %v599, %v750
    %v767 = vmul.f32 %v601, %v751
    %v768 = vmul.f32 %v603, %v752
    %v769 = vmul.f32 %v605, %v753
    %v770 = vmul.f32 %v607, %v754
    %v771 = vmul.f32 %v609, %v755
    %v772 = vmul.f32 %v611, %v756
    %v773 = vmul.f32 %v613, %v757
    %774 = vadd.xlane.f32.xlu0 %v711
    %v775 = vpop.xlane.xlu0 %774
    %776 = vadd.xlane.f32.xlu0 %v713
    %v777 = vpop.xlane.xlu0 %776
    %778 = vadd.xlane.f32.xlu0 %v715
    %v779 = vpop.xlane.xlu0 %778
    %780 = vadd.xlane.f32.xlu0 %v717
    %v781 = vpop.xlane.xlu0 %780
    %782 = vadd.xlane.f32.xlu0 %v719
    %v783 = vpop.xlane.xlu0 %782
    %784 = vadd.xlane.f32.xlu0 %v721
    %v785 = vpop.xlane.xlu0 %784
    %786 = vadd.xlane.f32.xlu0 %v723
    %v787 = vpop.xlane.xlu0 %786
    %788 = vadd.xlane.f32.xlu0 %v725
    %v789 = vpop.xlane.xlu0 %788
    %790 = vadd.xlane.f32.xlu0 %v727
    %v791 = vpop.xlane.xlu0 %790
    %792 = vadd.xlane.f32.xlu0 %v729
    %v793 = vpop.xlane.xlu0 %792
    %794 = vadd.xlane.f32.xlu0 %v731
    %v795 = vpop.xlane.xlu0 %794
    %796 = vadd.xlane.f32.xlu0 %v733
    %v797 = vpop.xlane.xlu0 %796
    %798 = vadd.xlane.f32.xlu0 %v735
    %v799 = vpop.xlane.xlu0 %798
    %800 = vadd.xlane.f32.xlu0 %v737
    %v801 = vpop.xlane.xlu0 %800
    %802 = vadd.xlane.f32.xlu0 %v739
    %v803 = vpop.xlane.xlu0 %802
    %804 = vadd.xlane.f32.xlu0 %v741
    %v805 = vpop.xlane.xlu0 %804
    %v806 = vadd.f32 %v758, %v775
    %v807 = vadd.f32 %v759, %v777
    %v808 = vadd.f32 %v760, %v779
    %v809 = vadd.f32 %v761, %v781
    %v810 = vadd.f32 %v762, %v783
    %v811 = vadd.f32 %v763, %v785
    %v812 = vadd.f32 %v764, %v787
    %v813 = vadd.f32 %v765, %v789
    %v814 = vadd.f32 %v766, %v791
    %v815 = vadd.f32 %v767, %v793
    %v816 = vadd.f32 %v768, %v795
    %v817 = vadd.f32 %v769, %v797
    %v818 = vadd.f32 %v770, %v799
    %v819 = vadd.f32 %v771, %v801
    %v820 = vadd.f32 %v772, %v803
    %v821 = vadd.f32 %v773, %v805
    %vm822 = vcmask 7168
    %823 = vst.msk [vmem:[#allocation4] sm:$0xff] %vm822, %v806
    %824 = vst.msk [vmem:[#allocation4 + $0x8] sm:$0xff] %vm822, %v807
    %825 = vst.msk [vmem:[#allocation4 + $0x10] sm:$0xff] %vm822, %v808
    %826 = vst.msk [vmem:[#allocation4 + $0x18] sm:$0xff] %vm822, %v809
    %827 = vst.msk [vmem:[#allocation4 + $0x20] sm:$0xff] %vm822, %v810
    %828 = vst.msk [vmem:[#allocation4 + $0x28] sm:$0xff] %vm822, %v811
    %829 = vst.msk [vmem:[#allocation4 + $0x30] sm:$0xff] %vm822, %v812
    %830 = vst.msk [vmem:[#allocation4 + $0x38] sm:$0xff] %vm822, %v813
    %831 = vst.msk [vmem:[#allocation4 + $0x40] sm:$0xff] %vm822, %v814
    %832 = vst.msk [vmem:[#allocation4 + $0x48] sm:$0xff] %vm822, %v815
    %833 = vst.msk [vmem:[#allocation4 + $0x50] sm:$0xff] %vm822, %v816
    %834 = vst.msk [vmem:[#allocation4 + $0x58] sm:$0xff] %vm822, %v817
    %835 = vst.msk [vmem:[#allocation4 + $0x60] sm:$0xff] %vm822, %v818
    %836 = vst.msk [vmem:[#allocation4 + $0x68] sm:$0xff] %vm822, %v819
    %837 = vst.msk [vmem:[#allocation4 + $0x70] sm:$0xff] %vm822, %v820
    %838 = vst.msk [vmem:[#allocation4 + $0x78] sm:$0xff] %vm822, %v821
    %839 = vst.msk [vmem:[#allocation3] sm:$0xff] %vm822, %v550
    %840 = vst.msk [vmem:[#allocation3 + $0x8] sm:$0xff] %vm822, %v551
    %841 = vst.msk [vmem:[#allocation3 + $0x10] sm:$0xff] %vm822, %v552
    %842 = vst.msk [vmem:[#allocation3 + $0x18] sm:$0xff] %vm822, %v553
    %843 = vst.msk [vmem:[#allocation3 + $0x20] sm:$0xff] %vm822, %v554
    %844 = vst.msk [vmem:[#allocation3 + $0x28] sm:$0xff] %vm822, %v555
    %845 = vst.msk [vmem:[#allocation3 + $0x30] sm:$0xff] %vm822, %v556
    %846 = vst.msk [vmem:[#allocation3 + $0x38] sm:$0xff] %vm822, %v557
    %847 = vst.msk [vmem:[#allocation3 + $0x40] sm:$0xff] %vm822, %v558
    %848 = vst.msk [vmem:[#allocation3 + $0x48] sm:$0xff] %vm822, %v559
    %849 = vst.msk [vmem:[#allocation3 + $0x50] sm:$0xff] %vm822, %v560
    %850 = vst.msk [vmem:[#allocation3 + $0x58] sm:$0xff] %vm822, %v561
    %851 = vst.msk [vmem:[#allocation3 + $0x60] sm:$0xff] %vm822, %v562
    %852 = vst.msk [vmem:[#allocation3 + $0x68] sm:$0xff] %vm822, %v563
    %853 = vst.msk [vmem:[#allocation3 + $0x70] sm:$0xff] %vm822, %v564
    %854 = vst.msk [vmem:[#allocation3 + $0x78] sm:$0xff] %vm822, %v565
    %v855 = vld [vmem:[%s3] sm:$0xff]
    %v856 = vld [vmem:[%s3 + $0x8] sm:$0xff]
    %v857 = vld [vmem:[%s3 + $0x10] sm:$0xff]
    %v858 = vld [vmem:[%s3 + $0x18] sm:$0xff]
    %v859 = vld [vmem:[%s3 + $0x20] sm:$0xff]
    %v860 = vld [vmem:[%s3 + $0x28] sm:$0xff]
    %v861 = vld [vmem:[%s3 + $0x30] sm:$0xff]
    %v862 = vld [vmem:[%s3 + $0x38] sm:$0xff]
    %v863 = vld [vmem:[%s3 + $0x40] sm:$0xff]
    %v864 = vld [vmem:[%s3 + $0x48] sm:$0xff]
    %v865 = vld [vmem:[%s3 + $0x50] sm:$0xff]
    %v866 = vld [vmem:[%s3 + $0x58] sm:$0xff]
    %v867 = vld [vmem:[%s3 + $0x60] sm:$0xff]
    %v868 = vld [vmem:[%s3 + $0x68] sm:$0xff]
    %v869 = vld [vmem:[%s3 + $0x70] sm:$0xff]
    %v870 = vld [vmem:[%s3 + $0x78] sm:$0xff]
    %v871 = vlaneseq
    %v872 = vand.u32 %v871, 127
    %s873 = smul.u32 0, 128
    %v874 = vstv %s873
    %v875 = vadd.s32 %v872, %v874
    %v876 = vld [vmem:[#allocation5] sm:$0xff]
    %v877 = vld [vmem:[#allocation5 + $0x8] sm:$0xff]
    %v878 = vld [vmem:[#allocation5 + $0x10] sm:$0xff]
    %v879 = vld [vmem:[#allocation5 + $0x18] sm:$0xff]
    %v880 = vld [vmem:[#allocation5 + $0x20] sm:$0xff]
    %v881 = vld [vmem:[#allocation5 + $0x28] sm:$0xff]
    %v882 = vld [vmem:[#allocation5 + $0x30] sm:$0xff]
    %v883 = vld [vmem:[#allocation5 + $0x38] sm:$0xff]
    %v884 = vld [vmem:[#allocation5 + $0x40] sm:$0xff]
    %v885 = vld [vmem:[#allocation5 + $0x48] sm:$0xff]
    %v886 = vld [vmem:[#allocation5 + $0x50] sm:$0xff]
    %v887 = vld [vmem:[#allocation5 + $0x58] sm:$0xff]
    %v888 = vld [vmem:[#allocation5 + $0x60] sm:$0xff]
    %v889 = vld [vmem:[#allocation5 + $0x68] sm:$0xff]
    %v890 = vld [vmem:[#allocation5 + $0x70] sm:$0xff]
    %v891 = vld [vmem:[#allocation5 + $0x78] sm:$0xff]
    %892 = vset.pattern.permute.xlu0 0
    %893 = vperm.xlu0 %892, %v855
    %v894 = vpop.permute.xlu0 %893
    %895 = vset.pattern.permute.xlu0 0
    %896 = vperm.xlu0 %895, %v856
    %v897 = vpop.permute.xlu0 %896
    %898 = vset.pattern.permute.xlu0 0
    %899 = vperm.xlu0 %898, %v857
    %v900 = vpop.permute.xlu0 %899
    %901 = vset.pattern.permute.xlu0 0
    %902 = vperm.xlu0 %901, %v858
    %v903 = vpop.permute.xlu0 %902
    %904 = vset.pattern.permute.xlu0 0
    %905 = vperm.xlu0 %904, %v859
    %v906 = vpop.permute.xlu0 %905
    %907 = vset.pattern.permute.xlu0 0
    %908 = vperm.xlu0 %907, %v860
    %v909 = vpop.permute.xlu0 %908
    %910 = vset.pattern.permute.xlu0 0
    %911 = vperm.xlu0 %910, %v861
    %v912 = vpop.permute.xlu0 %911
    %913 = vset.pattern.permute.xlu0 0
    %914 = vperm.xlu0 %913, %v862
    %v915 = vpop.permute.xlu0 %914
    %916 = vset.pattern.permute.xlu0 0
    %917 = vperm.xlu0 %916, %v863
    %v918 = vpop.permute.xlu0 %917
    %919 = vset.pattern.permute.xlu0 0
    %920 = vperm.xlu0 %919, %v864
    %v921 = vpop.permute.xlu0 %920
    %922 = vset.pattern.permute.xlu0 0
    %923 = vperm.xlu0 %922, %v865
    %v924 = vpop.permute.xlu0 %923
    %925 = vset.pattern.permute.xlu0 0
    %926 = vperm.xlu0 %925, %v866
    %v927 = vpop.permute.xlu0 %926
    %928 = vset.pattern.permute.xlu0 0
    %929 = vperm.xlu0 %928, %v867
    %v930 = vpop.permute.xlu0 %929
    %931 = vset.pattern.permute.xlu0 0
    %932 = vperm.xlu0 %931, %v868
    %v933 = vpop.permute.xlu0 %932
    %934 = vset.pattern.permute.xlu0 0
    %935 = vperm.xlu0 %934, %v869
    %v936 = vpop.permute.xlu0 %935
    %937 = vset.pattern.permute.xlu0 0
    %938 = vperm.xlu0 %937, %v870
    %v939 = vpop.permute.xlu0 %938
    %vm940 = vcmp.eq.s32.totalorder %v875, %v894
    %vm941 = vcmp.eq.s32.totalorder %v875, %v897
    %vm942 = vcmp.eq.s32.totalorder %v875, %v900
    %vm943 = vcmp.eq.s32.totalorder %v875, %v903
    %vm944 = vcmp.eq.s32.totalorder %v875, %v906
    %vm945 = vcmp.eq.s32.totalorder %v875, %v909
    %vm946 = vcmp.eq.s32.totalorder %v875, %v912
    %vm947 = vcmp.eq.s32.totalorder %v875, %v915
    %vm948 = vcmp.eq.s32.totalorder %v875, %v918
    %vm949 = vcmp.eq.s32.totalorder %v875, %v921
    %vm950 = vcmp.eq.s32.totalorder %v875, %v924
    %vm951 = vcmp.eq.s32.totalorder %v875, %v927
    %vm952 = vcmp.eq.s32.totalorder %v875, %v930
    %vm953 = vcmp.eq.s32.totalorder %v875, %v933
    %vm954 = vcmp.eq.s32.totalorder %v875, %v936
    %vm955 = vcmp.eq.s32.totalorder %v875, %v939
    %v956 = vsel %vm940, %v440, 0.0
    %v957 = vsel %vm941, %v443, 0.0
    %v958 = vsel %vm942, %v448, 0.0
    %v959 = vsel %vm943, %v451, 0.0
    %v960 = vsel %vm944, %v456, 0.0
    %v961 = vsel %vm945, %v459, 0.0
    %v962 = vsel %vm946, %v464, 0.0
    %v963 = vsel %vm947, %v467, 0.0
    %v964 = vsel %vm948, %v472, 0.0
    %v965 = vsel %vm949, %v475, 0.0
    %v966 = vsel %vm950, %v480, 0.0
    %v967 = vsel %vm951, %v483, 0.0
    %v968 = vsel %vm952, %v488, 0.0
    %v969 = vsel %vm953, %v491, 0.0
    %v970 = vsel %vm954, %v496, 0.0
    %v971 = vsel %vm955, %v499, 0.0
    %972 = vadd.xlane.f32.xlu0 %v956
    %v973 = vpop.xlane.xlu0 %972
    %974 = vadd.xlane.f32.xlu0 %v957
    %v975 = vpop.xlane.xlu0 %974
    %976 = vadd.xlane.f32.xlu0 %v958
    %v977 = vpop.xlane.xlu0 %976
    %978 = vadd.xlane.f32.xlu0 %v959
    %v979 = vpop.xlane.xlu0 %978
    %980 = vadd.xlane.f32.xlu0 %v960
    %v981 = vpop.xlane.xlu0 %980
    %982 = vadd.xlane.f32.xlu0 %v961
    %v983 = vpop.xlane.xlu0 %982
    %984 = vadd.xlane.f32.xlu0 %v962
    %v985 = vpop.xlane.xlu0 %984
    %986 = vadd.xlane.f32.xlu0 %v963
    %v987 = vpop.xlane.xlu0 %986
    %988 = vadd.xlane.f32.xlu0 %v964
    %v989 = vpop.xlane.xlu0 %988
    %990 = vadd.xlane.f32.xlu0 %v965
    %v991 = vpop.xlane.xlu0 %990
    %992 = vadd.xlane.f32.xlu0 %v966
    %v993 = vpop.xlane.xlu0 %992
    %994 = vadd.xlane.f32.xlu0 %v967
    %v995 = vpop.xlane.xlu0 %994
    %996 = vadd.xlane.f32.xlu0 %v968
    %v997 = vpop.xlane.xlu0 %996
    %998 = vadd.xlane.f32.xlu0 %v969
    %v999 = vpop.xlane.xlu0 %998
    %1000 = vadd.xlane.f32.xlu0 %v970
    %v1001 = vpop.xlane.xlu0 %1000
    %1002 = vadd.xlane.f32.xlu0 %v971
    %v1003 = vpop.xlane.xlu0 %1002
    %v1004 = vadd.f32 %v876, %v973
    %v1005 = vadd.f32 %v877, %v975
    %v1006 = vadd.f32 %v878, %v977
    %v1007 = vadd.f32 %v879, %v979
    %v1008 = vadd.f32 %v880, %v981
    %v1009 = vadd.f32 %v881, %v983
    %v1010 = vadd.f32 %v882, %v985
    %v1011 = vadd.f32 %v883, %v987
    %v1012 = vadd.f32 %v884, %v989
    %v1013 = vadd.f32 %v885, %v991
    %v1014 = vadd.f32 %v886, %v993
    %v1015 = vadd.f32 %v887, %v995
    %v1016 = vadd.f32 %v888, %v997
    %v1017 = vadd.f32 %v889, %v999
    %v1018 = vadd.f32 %v890, %v1001
    %v1019 = vadd.f32 %v891, %v1003
    %1020 = vst.msk [vmem:[#allocation5] sm:$0xff] %vm822, %v1004
    %1021 = vst.msk [vmem:[#allocation5 + $0x8] sm:$0xff] %vm822, %v1005
    %1022 = vst.msk [vmem:[#allocation5 + $0x10] sm:$0xff] %vm822, %v1006
    %1023 = vst.msk [vmem:[#allocation5 + $0x18] sm:$0xff] %vm822, %v1007
    %1024 = vst.msk [vmem:[#allocation5 + $0x20] sm:$0xff] %vm822, %v1008
    %1025 = vst.msk [vmem:[#allocation5 + $0x28] sm:$0xff] %vm822, %v1009
    %1026 = vst.msk [vmem:[#allocation5 + $0x30] sm:$0xff] %vm822, %v1010
    %1027 = vst.msk [vmem:[#allocation5 + $0x38] sm:$0xff] %vm822, %v1011
    %1028 = vst.msk [vmem:[#allocation5 + $0x40] sm:$0xff] %vm822, %v1012
    %1029 = vst.msk [vmem:[#allocation5 + $0x48] sm:$0xff] %vm822, %v1013
    %1030 = vst.msk [vmem:[#allocation5 + $0x50] sm:$0xff] %vm822, %v1014
    %1031 = vst.msk [vmem:[#allocation5 + $0x58] sm:$0xff] %vm822, %v1015
    %1032 = vst.msk [vmem:[#allocation5 + $0x60] sm:$0xff] %vm822, %v1016
    %1033 = vst.msk [vmem:[#allocation5 + $0x68] sm:$0xff] %vm822, %v1017
    %1034 = vst.msk [vmem:[#allocation5 + $0x70] sm:$0xff] %vm822, %v1018
    %1035 = vst.msk [vmem:[#allocation5 + $0x78] sm:$0xff] %vm822, %v1019
    // Predicated region
    $region26: #{tpu_custom_call.1} parent=1 // pred_check
      %p1036 = pneg %p22
    $region27: #{tpu_custom_call.1} parent=1 // pred_check_branch
      %1038 = sbr.rel (%p1036) target = $region29
    $region28: #{tpu_custom_call.1} parent=1 // pred_region
      %v1039 = vld [vmem:[#allocation3] sm:$0xff]
      %v1040 = vld [vmem:[#allocation3 + $0x8] sm:$0xff]
      %v1041 = vld [vmem:[#allocation3 + $0x10] sm:$0xff]
      %v1042 = vld [vmem:[#allocation3 + $0x18] sm:$0xff]
      %v1043 = vld [vmem:[#allocation3 + $0x20] sm:$0xff]
      %v1044 = vld [vmem:[#allocation3 + $0x28] sm:$0xff]
      %v1045 = vld [vmem:[#allocation3 + $0x30] sm:$0xff]
      %v1046 = vld [vmem:[#allocation3 + $0x38] sm:$0xff]
      %v1047 = vld [vmem:[#allocation3 + $0x40] sm:$0xff]
      %v1048 = vld [vmem:[#allocation3 + $0x48] sm:$0xff]
      %v1049 = vld [vmem:[#allocation3 + $0x50] sm:$0xff]
      %v1050 = vld [vmem:[#allocation3 + $0x58] sm:$0xff]
      %v1051 = vld [vmem:[#allocation3 + $0x60] sm:$0xff]
      %v1052 = vld [vmem:[#allocation3 + $0x68] sm:$0xff]
      %v1053 = vld [vmem:[#allocation3 + $0x70] sm:$0xff]
      %v1054 = vld [vmem:[#allocation3 + $0x78] sm:$0xff]
      %v1055 = vld [vmem:[#allocation4] sm:$0xff]
      %v1056 = vld [vmem:[#allocation4 + $0x8] sm:$0xff]
      %v1057 = vld [vmem:[#allocation4 + $0x10] sm:$0xff]
      %v1058 = vld [vmem:[#allocation4 + $0x18] sm:$0xff]
      %v1059 = vld [vmem:[#allocation4 + $0x20] sm:$0xff]
      %v1060 = vld [vmem:[#allocation4 + $0x28] sm:$0xff]
      %v1061 = vld [vmem:[#allocation4 + $0x30] sm:$0xff]
      %v1062 = vld [vmem:[#allocation4 + $0x38] sm:$0xff]
      %v1063 = vld [vmem:[#allocation4 + $0x40] sm:$0xff]
      %v1064 = vld [vmem:[#allocation4 + $0x48] sm:$0xff]
      %v1065 = vld [vmem:[#allocation4 + $0x50] sm:$0xff]
      %v1066 = vld [vmem:[#allocation4 + $0x58] sm:$0xff]
      %v1067 = vld [vmem:[#allocation4 + $0x60] sm:$0xff]
      %v1068 = vld [vmem:[#allocation4 + $0x68] sm:$0xff]
      %v1069 = vld [vmem:[#allocation4 + $0x70] sm:$0xff]
      %v1070 = vld [vmem:[#allocation4 + $0x78] sm:$0xff]
      %v1071 = vlog2.pop %v1055
      %v1072 = vmul.f32 %v1071, 0.6931472
      %v1073 = vlog2.pop %v1056
      %v1074 = vmul.f32 %v1073, 0.6931472
      %v1075 = vlog2.pop %v1057
      %v1076 = vmul.f32 %v1075, 0.6931472
      %v1077 = vlog2.pop %v1058
      %v1078 = vmul.f32 %v1077, 0.6931472
      %v1079 = vlog2.pop %v1059
      %v1080 = vmul.f32 %v1079, 0.6931472
      %v1081 = vlog2.pop %v1060
      %v1082 = vmul.f32 %v1081, 0.6931472
      %v1083 = vlog2.pop %v1061
      %v1084 = vmul.f32 %v1083, 0.6931472
      %v1085 = vlog2.pop %v1062
      %v1086 = vmul.f32 %v1085, 0.6931472
      %v1087 = vlog2.pop %v1063
      %v1088 = vmul.f32 %v1087, 0.6931472
      %v1089 = vlog2.pop %v1064
      %v1090 = vmul.f32 %v1089, 0.6931472
      %v1091 = vlog2.pop %v1065
      %v1092 = vmul.f32 %v1091, 0.6931472
      %v1093 = vlog2.pop %v1066
      %v1094 = vmul.f32 %v1093, 0.6931472
      %v1095 = vlog2.pop %v1067
      %v1096 = vmul.f32 %v1095, 0.6931472
      %v1097 = vlog2.pop %v1068
      %v1098 = vmul.f32 %v1097, 0.6931472
      %v1099 = vlog2.pop %v1069
      %v1100 = vmul.f32 %v1099, 0.6931472
      %v1101 = vlog2.pop %v1070
      %v1102 = vmul.f32 %v1101, 0.6931472
      %v1103 = vadd.f32 %v1039, %v1072
      %v1104 = vadd.f32 %v1040, %v1074
      %v1105 = vadd.f32 %v1041, %v1076
      %v1106 = vadd.f32 %v1042, %v1078
      %v1107 = vadd.f32 %v1043, %v1080
      %v1108 = vadd.f32 %v1044, %v1082
      %v1109 = vadd.f32 %v1045, %v1084
      %v1110 = vadd.f32 %v1046, %v1086
      %v1111 = vadd.f32 %v1047, %v1088
      %v1112 = vadd.f32 %v1048, %v1090
      %v1113 = vadd.f32 %v1049, %v1092
      %v1114 = vadd.f32 %v1050, %v1094
      %v1115 = vadd.f32 %v1051, %v1096
      %v1116 = vadd.f32 %v1052, %v1098
      %v1117 = vadd.f32 %v1053, %v1100
      %v1118 = vadd.f32 %v1054, %v1102
      %v1119 = vld [vmem:[#allocation5] sm:$0xff]
      %v1120 = vld [vmem:[#allocation5 + $0x8] sm:$0xff]
      %v1121 = vld [vmem:[#allocation5 + $0x10] sm:$0xff]
      %v1122 = vld [vmem:[#allocation5 + $0x18] sm:$0xff]
      %v1123 = vld [vmem:[#allocation5 + $0x20] sm:$0xff]
      %v1124 = vld [vmem:[#allocation5 + $0x28] sm:$0xff]
      %v1125 = vld [vmem:[#allocation5 + $0x30] sm:$0xff]
      %v1126 = vld [vmem:[#allocation5 + $0x38] sm:$0xff]
      %v1127 = vld [vmem:[#allocation5 + $0x40] sm:$0xff]
      %v1128 = vld [vmem:[#allocation5 + $0x48] sm:$0xff]
      %v1129 = vld [vmem:[#allocation5 + $0x50] sm:$0xff]
      %v1130 = vld [vmem:[#allocation5 + $0x58] sm:$0xff]
      %v1131 = vld [vmem:[#allocation5 + $0x60] sm:$0xff]
      %v1132 = vld [vmem:[#allocation5 + $0x68] sm:$0xff]
      %v1133 = vld [vmem:[#allocation5 + $0x70] sm:$0xff]
      %v1134 = vld [vmem:[#allocation5 + $0x78] sm:$0xff]
      %v1135 = vsub.f32 %v1103, %v1119
      %v1136 = vsub.f32 %v1104, %v1120
      %v1137 = vsub.f32 %v1105, %v1121
      %v1138 = vsub.f32 %v1106, %v1122
      %v1139 = vsub.f32 %v1107, %v1123
      %v1140 = vsub.f32 %v1108, %v1124
      %v1141 = vsub.f32 %v1109, %v1125
      %v1142 = vsub.f32 %v1110, %v1126
      %v1143 = vsub.f32 %v1111, %v1127
      %v1144 = vsub.f32 %v1112, %v1128
      %v1145 = vsub.f32 %v1113, %v1129
      %v1146 = vsub.f32 %v1114, %v1130
      %v1147 = vsub.f32 %v1115, %v1131
      %v1148 = vsub.f32 %v1116, %v1132
      %v1149 = vsub.f32 %v1117, %v1133
      %v1150 = vsub.f32 %v1118, %v1134
      %v1151 = vld [vmem:[%s4] sm:$0xff]
      %v1152 = vld [vmem:[%s4 + $0x8] sm:$0xff]
      %v1153 = vld [vmem:[%s4 + $0x10] sm:$0xff]
      %v1154 = vld [vmem:[%s4 + $0x18] sm:$0xff]
      %v1155 = vld [vmem:[%s4 + $0x20] sm:$0xff]
      %v1156 = vld [vmem:[%s4 + $0x28] sm:$0xff]
      %v1157 = vld [vmem:[%s4 + $0x30] sm:$0xff]
      %v1158 = vld [vmem:[%s4 + $0x38] sm:$0xff]
      %v1159 = vld [vmem:[%s4 + $0x40] sm:$0xff]
      %v1160 = vld [vmem:[%s4 + $0x48] sm:$0xff]
      %v1161 = vld [vmem:[%s4 + $0x50] sm:$0xff]
      %v1162 = vld [vmem:[%s4 + $0x58] sm:$0xff]
      %v1163 = vld [vmem:[%s4 + $0x60] sm:$0xff]
      %v1164 = vld [vmem:[%s4 + $0x68] sm:$0xff]
      %v1165 = vld [vmem:[%s4 + $0x70] sm:$0xff]
      %v1166 = vld [vmem:[%s4 + $0x78] sm:$0xff]
      %v1167 = vld [vmem:[%s3] sm:$0xff]
      %v1168 = vld [vmem:[%s3 + $0x8] sm:$0xff]
      %v1169 = vld [vmem:[%s3 + $0x10] sm:$0xff]
      %v1170 = vld [vmem:[%s3 + $0x18] sm:$0xff]
      %v1171 = vld [vmem:[%s3 + $0x20] sm:$0xff]
      %v1172 = vld [vmem:[%s3 + $0x28] sm:$0xff]
      %v1173 = vld [vmem:[%s3 + $0x30] sm:$0xff]
      %v1174 = vld [vmem:[%s3 + $0x38] sm:$0xff]
      %v1175 = vld [vmem:[%s3 + $0x40] sm:$0xff]
      %v1176 = vld [vmem:[%s3 + $0x48] sm:$0xff]
      %v1177 = vld [vmem:[%s3 + $0x50] sm:$0xff]
      %v1178 = vld [vmem:[%s3 + $0x58] sm:$0xff]
      %v1179 = vld [vmem:[%s3 + $0x60] sm:$0xff]
      %v1180 = vld [vmem:[%s3 + $0x68] sm:$0xff]
      %v1181 = vld [vmem:[%s3 + $0x70] sm:$0xff]
      %v1182 = vld [vmem:[%s3 + $0x78] sm:$0xff]
      %vm1183 = vcmp.ne.s32.totalorder %v1167, 4294967295
      %vm1184 = vcmp.ne.s32.totalorder %v1168, 4294967295
      %vm1185 = vcmp.ne.s32.totalorder %v1169, 4294967295
      %vm1186 = vcmp.ne.s32.totalorder %v1170, 4294967295
      %vm1187 = vcmp.ne.s32.totalorder %v1171, 4294967295
      %vm1188 = vcmp.ne.s32.totalorder %v1172, 4294967295
      %vm1189 = vcmp.ne.s32.totalorder %v1173, 4294967295
      %vm1190 = vcmp.ne.s32.totalorder %v1174, 4294967295
      %vm1191 = vcmp.ne.s32.totalorder %v1175, 4294967295
      %vm1192 = vcmp.ne.s32.totalorder %v1176, 4294967295
      %vm1193 = vcmp.ne.s32.totalorder %v1177, 4294967295
      %vm1194 = vcmp.ne.s32.totalorder %v1178, 4294967295
      %vm1195 = vcmp.ne.s32.totalorder %v1179, 4294967295
      %vm1196 = vcmp.ne.s32.totalorder %v1180, 4294967295
      %vm1197 = vcmp.ne.s32.totalorder %v1181, 4294967295
      %vm1198 = vcmp.ne.s32.totalorder %v1182, 4294967295
      %v1199 = vsel %vm1183, 1, 0
      %v1200 = vsel %vm1184, 1, 0
      %v1201 = vsel %vm1185, 1, 0
      %v1202 = vsel %vm1186, 1, 0
      %v1203 = vsel %vm1187, 1, 0
      %v1204 = vsel %vm1188, 1, 0
      %v1205 = vsel %vm1189, 1, 0
      %v1206 = vsel %vm1190, 1, 0
      %v1207 = vsel %vm1191, 1, 0
      %v1208 = vsel %vm1192, 1, 0
      %v1209 = vsel %vm1193, 1, 0
      %v1210 = vsel %vm1194, 1, 0
      %v1211 = vsel %vm1195, 1, 0
      %v1212 = vsel %vm1196, 1, 0
      %v1213 = vsel %vm1197, 1, 0
      %v1214 = vsel %vm1198, 1, 0
      %v1215 = vcvt.s32.f32 %v1199
      %v1216 = vcvt.s32.f32 %v1200
      %v1217 = vcvt.s32.f32 %v1201
      %v1218 = vcvt.s32.f32 %v1202
      %v1219 = vcvt.s32.f32 %v1203
      %v1220 = vcvt.s32.f32 %v1204
      %v1221 = vcvt.s32.f32 %v1205
      %v1222 = vcvt.s32.f32 %v1206
      %v1223 = vcvt.s32.f32 %v1207
      %v1224 = vcvt.s32.f32 %v1208
      %v1225 = vcvt.s32.f32 %v1209
      %v1226 = vcvt.s32.f32 %v1210
      %v1227 = vcvt.s32.f32 %v1211
      %v1228 = vcvt.s32.f32 %v1212
      %v1229 = vcvt.s32.f32 %v1213
      %v1230 = vcvt.s32.f32 %v1214
      %v1231 = vmul.f32 %v1151, %v1215
      %v1232 = vmul.f32 %v1152, %v1216
      %v1233 = vmul.f32 %v1153, %v1217
      %v1234 = vmul.f32 %v1154, %v1218
      %v1235 = vmul.f32 %v1155, %v1219
      %v1236 = vmul.f32 %v1156, %v1220
      %v1237 = vmul.f32 %v1157, %v1221
      %v1238 = vmul.f32 %v1158, %v1222
      %v1239 = vmul.f32 %v1159, %v1223
      %v1240 = vmul.f32 %v1160, %v1224
      %v1241 = vmul.f32 %v1161, %v1225
      %v1242 = vmul.f32 %v1162, %v1226
      %v1243 = vmul.f32 %v1163, %v1227
      %v1244 = vmul.f32 %v1164, %v1228
      %v1245 = vmul.f32 %v1165, %v1229
      %v1246 = vmul.f32 %v1166, %v1230
      %v1247 = vmul.f32 %v1135, %v1231
      %v1248 = vmul.f32 %v1136, %v1232
      %v1249 = vmul.f32 %v1137, %v1233
      %v1250 = vmul.f32 %v1138, %v1234
      %v1251 = vmul.f32 %v1139, %v1235
      %v1252 = vmul.f32 %v1140, %v1236
      %v1253 = vmul.f32 %v1141, %v1237
      %v1254 = vmul.f32 %v1142, %v1238
      %v1255 = vmul.f32 %v1143, %v1239
      %v1256 = vmul.f32 %v1144, %v1240
      %v1257 = vmul.f32 %v1145, %v1241
      %v1258 = vmul.f32 %v1146, %v1242
      %v1259 = vmul.f32 %v1147, %v1243
      %v1260 = vmul.f32 %v1148, %v1244
      %v1261 = vmul.f32 %v1149, %v1245
      %v1262 = vmul.f32 %v1150, %v1246
      %v1263 = vsel %vm822, %v1247, 0.0
      %v1264 = vsel %vm822, %v1248, 0.0
      %v1265 = vadd.f32 %v1263, %v1264
      %v1266 = vsel %vm822, %v1249, 0.0
      %v1267 = vadd.f32 %v1265, %v1266
      %v1268 = vsel %vm822, %v1250, 0.0
      %v1269 = vadd.f32 %v1267, %v1268
      %v1270 = vsel %vm822, %v1251, 0.0
      %v1271 = vadd.f32 %v1269, %v1270
      %v1272 = vsel %vm822, %v1252, 0.0
      %v1273 = vadd.f32 %v1271, %v1272
      %v1274 = vsel %vm822, %v1253, 0.0
      %v1275 = vadd.f32 %v1273, %v1274
      %v1276 = vsel %vm822, %v1254, 0.0
      %v1277 = vadd.f32 %v1275, %v1276
      %v1278 = vsel %vm822, %v1255, 0.0
      %v1279 = vadd.f32 %v1277, %v1278
      %v1280 = vsel %vm822, %v1256, 0.0
      %v1281 = vadd.f32 %v1279, %v1280
      %v1282 = vsel %vm822, %v1257, 0.0
      %v1283 = vadd.f32 %v1281, %v1282
      %v1284 = vsel %vm822, %v1258, 0.0
      %v1285 = vadd.f32 %v1283, %v1284
      %v1286 = vsel %vm822, %v1259, 0.0
      %v1287 = vadd.f32 %v1285, %v1286
      %v1288 = vsel %vm822, %v1260, 0.0
      %v1289 = vadd.f32 %v1287, %v1288
      %v1290 = vsel %vm822, %v1261, 0.0
      %v1291 = vadd.f32 %v1289, %v1290
      %v1292 = vsel %vm822, %v1262, 0.0
      %v1293 = vadd.f32 %v1291, %v1292
      %v1294 = vrot.slane %v1293, 4
      %v1295 = vadd.f32 %v1293, %v1294
      %v1296 = vrot.slane %v1295, 2
      %v1297 = vadd.f32 %v1295, %v1296
      %v1298 = vrot.slane %v1297, 1
      %v1299 = vadd.f32 %v1297, %v1298
      %1301 = vset.pattern.permute.xlu0 0
      %1302 = vperm.xlu0 %1301, %v1299
      %v1303 = vpop.permute.xlu0 %1302
      %1305 = vst [vmem:[#allocation6] sm:$0xff] %v1303
    $region29: #{tpu_custom_call.1} parent=1 // pred_fallthru
      _
    // Predicated region
    $region30: #{tpu_custom_call.1} parent=1 // pred_check
      _
    $region31: #{tpu_custom_call.1} parent=1 // pred_check_branch
      %1307 = sbr.rel (0) target = $region33
    $region32: #{tpu_custom_call.1} parent=1 // pred_region
      %s1309 = ssub.s32 128, 128
      %1310 = vsyncadd [#allocation7], %s1309
      %s1312 = sshll.u32 [#allocation6], 4
      %s1313 = int_to_ptr.vmem [resolvable:$true] %s1312
      %1315 = dma.vmem_to_hbm [thread:$0]  %s1313, 128, %s5, [#allocation7]
    $region33: #{tpu_custom_call.1} parent=1 // pred_fallthru
      _
    // Predicated region
    $region34: #{tpu_custom_call.1} parent=1 // pred_check
      _
    $region35: #{tpu_custom_call.1} parent=1 // pred_check_branch
      %1317 = sbr.rel (0) target = $region37
    $region36: #{tpu_custom_call.1} parent=1 // pred_region
      %1318 = dma.done [#allocation7], 128
    $region37: #{tpu_custom_call.1} parent=1 // pred_fallthru
      _
    %1319 = vsyncpa [#allocation7], 1

</llo_original>
